<compile_context>
chip_gen: v7x
topology: tpu7x:2x2x1
jax: 0.10.0
libtpu: 0.0.40
codegen_flags: <defaults>
</compile_context>

<pallas_src>
import jax
import jax.numpy as jnp
from jax import lax
from jax.experimental import pallas as pl
from jax.experimental.pallas import tpu as pltpu

LN_EPS = 1e-5   # PyTorch nn.LayerNorm default
LANE = 128


def _sentence_re_kernel(
    masks_ref,              # [TB, 2, TS]  (bf16/f32) stacked [e1_mask, e2_mask]
    seq_ref,                # [TB, TS, E]  (bf16/f32) BERT sequence_output tile
    pooled_ref,             # [TB, E]      f32        BERT pooled_output
    w_cls_ref, b_cls_ref,   # [E, E], [1, E]
    w_e1_ref, b_e1_ref,     # [E, E], [1, E]
    w_e2_ref, b_e2_ref,     # [E, E], [1, E]
    w_clf_ref,              # [3E, Lp]  classifier weight, LayerNorm gamma folded in
    b_clf_ref,              # [1, Lp]   classifier bias,  LayerNorm beta  folded in
    out_ref,                # [TB, Lp]  f32 logits (lane padded)
    sum_sc,                 # VMEM [TB, 2, E] f32 : masked sums accumulated over seq
    len_sc,                 # VMEM [TB, 2, 1] f32 : nonzero-mask counts
):
    s = pl.program_id(1)

    @pl.when(s == 0)
    def _init():
        sum_sc[...] = jnp.zeros_like(sum_sc)
        len_sc[...] = jnp.zeros_like(len_sc)

    masks = masks_ref[...]      # [TB, 2, TS]
    seq = seq_ref[...]          # [TB, TS, E]

    # Both entity masked-sums in a single batched contraction over this seq
    # tile (MXU, f32 accumulation) -- no [TB, TS, E] temporaries.
    sum_sc[...] += jnp.einsum("bmt,bte->bme", masks, seq,
                              preferred_element_type=jnp.float32)
    len_sc[...] += jnp.sum((masks != 0).astype(jnp.float32), axis=2,
                           keepdims=True)

    @pl.when(s == pl.num_programs(1) - 1)
    def _epilogue():
        # entity_average: sum / count-of-nonzero (NaN/Inf if a mask is empty,
        # matching PyTorch's behavior).
        e_avg = sum_sc[...] / len_sc[...]                 # [TB, 2, E]
        e1_avg = e_avg[:, 0, :]                           # [TB, E]
        e2_avg = e_avg[:, 1, :]                           # [TB, E]
        pooled = pooled_ref[...].astype(jnp.float32)      # [TB, E]

        def fc_tanh(x, w_ref, b_ref):
            # FCLayer(use_activation=True), eval mode: dropout==id -> tanh -> dense.
            h = jnp.tanh(x)
            return (jnp.dot(h, w_ref[...].astype(jnp.float32),
                            preferred_element_type=jnp.float32)
                    + b_ref[...].astype(jnp.float32))

        cls_h = fc_tanh(pooled, w_cls_ref, b_cls_ref)     # [TB, E]
        e1_h = fc_tanh(e1_avg, w_e1_ref, b_e1_ref)        # [TB, E]
        e2_h = fc_tanh(e2_avg, w_e2_ref, b_e2_ref)        # [TB, E]

        # torch.cat([pooled, e1, e2], dim=-1) followed by LayerNorm(3E).
        concat = jnp.concatenate([cls_h, e1_h, e2_h], axis=-1)   # [TB, 3E]
        mean = jnp.mean(concat, axis=-1, keepdims=True)
        var = jnp.mean((concat - mean) ** 2, axis=-1, keepdims=True)
        xhat = (concat - mean) * lax.rsqrt(var + LN_EPS)
        # LayerNorm affine is pre-folded into w_clf / b_clf, so the classifier
        # is one lane-dense K=3E matmul.
        out_ref[...] = (jnp.dot(xhat, w_clf_ref[...].astype(jnp.float32),
                                preferred_element_type=jnp.float32)
                        + b_clf_ref[...].astype(jnp.float32))


def prepare_params(params, lane=LANE):
    """One-time host-side parameter prep.

    * Folds LayerNorm gamma/beta into the classifier weight/bias:
        w_clf' = gamma[:, None] * w_clf ;  b_clf' = b_clf + beta @ w_clf
    * Pads the label dim up to a multiple of 128 lanes (sliced off later).
    """
    E = params["w_e1"].shape[0]
    w_clf = params["w_clf"].reshape(3 * E, -1).astype(jnp.float32)     # [3E, L]
    L = w_clf.shape[-1]
    gamma = params["gamma"].reshape(3 * E).astype(jnp.float32)
    beta = params["beta"].reshape(3 * E).astype(jnp.float32)

    w_fold = gamma[:, None] * w_clf                                    # [3E, L]
    b_fold = params["b_clf"].reshape(1, L).astype(jnp.float32) \
        + (beta @ w_clf)[None, :]                                      # [1, L]

    lp = ((L + lane - 1) // lane) * lane
    w_fold = jnp.pad(w_fold, ((0, 0), (0, lp - L)))
    b_fold = jnp.pad(b_fold, ((0, 0), (0, lp - L)))

    return {
        "w_cls": params["w_cls"].astype(jnp.float32),
        "b_cls": params["b_cls"].reshape(1, E).astype(jnp.float32),
        "w_e1": params["w_e1"].astype(jnp.float32),
        "b_e1": params["b_e1"].reshape(1, E).astype(jnp.float32),
        "w_e2": params["w_e2"].astype(jnp.float32),
        "b_e2": params["b_e2"].reshape(1, E).astype(jnp.float32),
        "w_clf": w_fold,
        "b_clf": b_fold,
        "num_labels": L,
    }


def sentence_re_head(seq, pooled, e1_mask, e2_mask, prepared, *, tb=None, ts=None):
    """Pallas forward of the SentenceRE head (post-BERT part of the module).

    seq      : [B, S, E]  bf16 or f32 (BERT sequence_output)
    pooled   : [B, E]     f32         (BERT pooled_output)
    e*_mask  : [B, S]                 entity span masks (1.0 inside the span)
    prepared : output of prepare_params()
    """
    B, S, E = seq.shape
    Lp = prepared["w_clf"].shape[-1]
    L = prepared["num_labels"]

    # Tile sizes: sublane-aligned batch tile, lane-aligned seq tile.  For
    # BERT-real sizes re-derive TS per chip so double-buffered seq tiles plus
    # the resident [E,E] weights stay inside the scoped VMEM limit
    # (64 MiB/TC on v7x, 128 MiB on v5e/v6e).
    if tb is None:
        tb = 8 if B % 8 == 0 else B
    if ts is None:
        ts = 128 if S % 128 == 0 else S
    assert B % tb == 0 and S % ts == 0, (B, tb, S, ts)

    # Stack the two span masks so both masked sums are one fused contraction.
    masks = jnp.stack([e1_mask, e2_mask], axis=1).astype(seq.dtype)    # [B, 2, S]

    const = lambda b, s: (0, 0)
    grid = (B // tb, S // ts)

    out = pl.pallas_call(
        _sentence_re_kernel,
        out_shape=jax.ShapeDtypeStruct((B, Lp), jnp.float32),
        grid_spec=pltpu.PrefetchScalarGridSpec(
            num_scalar_prefetch=0,
            grid=grid,
            in_specs=[
                pl.BlockSpec((tb, 2, ts), lambda b, s: (b, 0, s)),   # masks
                pl.BlockSpec((tb, ts, E), lambda b, s: (b, s, 0)),   # seq
                pl.BlockSpec((tb, E), lambda b, s: (b, 0)),          # pooled
                pl.BlockSpec((E, E), const), pl.BlockSpec((1, E), const),  # cls FC
                pl.BlockSpec((E, E), const), pl.BlockSpec((1, E), const),  # e1 FC
                pl.BlockSpec((E, E), const), pl.BlockSpec((1, E), const),  # e2 FC
                pl.BlockSpec((3 * E, Lp), const),                    # folded classifier W
                pl.BlockSpec((1, Lp), const),                        # folded classifier b
            ],
            out_specs=pl.BlockSpec((tb, Lp), lambda b, s: (b, 0)),
            scratch_shapes=[
                pltpu.VMEM((tb, 2, E), jnp.float32),   # masked-sum accumulator
                pltpu.VMEM((tb, 2, 1), jnp.float32),   # nonzero-count accumulator
            ],
        ),
        compiler_params=pltpu.CompilerParams(
            dimension_semantics=("parallel", "arbitrary"),
        ),
    )(masks, seq, pooled,
      prepared["w_cls"], prepared["b_cls"],
      prepared["w_e1"], prepared["b_e1"],
      prepared["w_e2"], prepared["b_e2"],
      prepared["w_clf"], prepared["b_clf"])

    return out[:, :L]


def reference_head(seq, pooled, e1_mask, e2_mask, params):
    """Plain-JAX f32 replica of the PyTorch forward (eval mode), unfolded params."""
    seq = seq.astype(jnp.float32)
    pooled = pooled.astype(jnp.float32)
    e1_mask = e1_mask.astype(jnp.float32)
    e2_mask = e2_mask.astype(jnp.float32)
    hi = lax.Precision.HIGHEST

    def entity_average(mask):
        summed = jnp.einsum("bs,bse->be", mask, seq, precision=hi)
        length = jnp.sum((mask != 0).astype(jnp.float32), axis=1, keepdims=True)
        return summed / length

    def fc(x, w, b, act=True):
        if act:
            x = jnp.tanh(x)
        return jnp.dot(x, w, precision=hi) + b

    E = params["w_e1"].shape[0]
    cls_h = fc(pooled, params["w_cls"], params["b_cls"].reshape(-1))
    e1_h = fc(entity_average(e1_mask), params["w_e1"], params["b_e1"].reshape(-1))
    e2_h = fc(entity_average(e2_mask), params["w_e2"], params["b_e2"].reshape(-1))

    concat = jnp.concatenate([cls_h, e1_h, e2_h], axis=-1)
    mean = concat.mean(-1, keepdims=True)
    var = ((concat - mean) ** 2).mean(-1, keepdims=True)
    normed = ((concat - mean) / jnp.sqrt(var + LN_EPS)
              * params["gamma"].reshape(-1) + params["beta"].reshape(-1))
    w_clf = params["w_clf"].reshape(3 * E, -1)
    return jnp.dot(normed, w_clf, precision=hi) + params["b_clf"].reshape(-1)


if __name__ == "__main__":
    # Small shapes that still exercise the (batch, seq) grid: 2 x 2 tiles.
    B, S, E, L = 16, 256, 128, 10   # batch, seq_len, embedding_dim, label_set_size

    key = jax.random.PRNGKey(0)
    ks = jax.random.split(key, 8)

    # BERT outputs; sequence activations stored in bf16 (halves the dominant HBM read).
    seq = jax.random.normal(ks[0], (B, S, E), jnp.float32).astype(jnp.bfloat16)
    pooled = jax.random.normal(ks[1], (B, E), jnp.float32)
    # Entity spans: e1 in the first seq tile, e2 crossing into the second tile.
    e1_mask = jnp.zeros((B, S), jnp.float32).at[:, 3:6].set(1.0)
    e2_mask = jnp.zeros((B, S), jnp.float32).at[:, 140:145].set(1.0)

    def lin_w(k, din, dout):
        return 0.02 * jax.random.normal(k, (din, dout), jnp.float32)

    params = {
        "w_cls": lin_w(ks[2], E, E), "b_cls": jnp.zeros((1, E), jnp.float32),
        "w_e1": lin_w(ks[3], E, E), "b_e1": jnp.full((1, E), 0.01, jnp.float32),
        "w_e2": lin_w(ks[4], E, E), "b_e2": jnp.full((1, E), -0.01, jnp.float32),
        # LayerNorm affine over 3E
        "gamma": 1.0 + 0.1 * jax.random.normal(ks[5], (3 * E,), jnp.float32),
        "beta": jnp.full((3 * E,), 0.05, jnp.float32),
        # classifier weight [3E, L]
        "w_clf": lin_w(ks[6], 3 * E, L),
        "b_clf": jnp.linspace(-0.1, 0.1, L, dtype=jnp.float32).reshape(1, L),
    }

    prepared = prepare_params(params)
    logits = sentence_re_head(seq, pooled, e1_mask, e2_mask, prepared)
    logits = jax.block_until_ready(logits)

    ref = reference_head(seq, pooled, e1_mask, e2_mask, params)
    assert logits.shape == (B, L), logits.shape
    # Tolerance covers MXU mixed-precision accumulation vs the HIGHEST-precision
    # f32 reference (logit scale ~0.4).
    assert jnp.allclose(logits, ref, atol=5e-3, rtol=5e-3), (logits, ref)

    print("KERNEL_OK")
</pallas_src>

<mosaic_0001>
module attributes {stable_mosaic.version = 11 : i64} {
  func.func @_sentence_re_kernel(%arg0: i32, %arg1: i32, %arg2: memref<8x2x128xbf16, #tpu.memory_space<vmem>>, %arg3: memref<8x128x128xbf16, #tpu.memory_space<vmem>>, %arg4: memref<8x128xf32, #tpu.memory_space<vmem>>, %arg5: memref<128x128xf32, #tpu.memory_space<vmem>>, %arg6: memref<1x128xf32, #tpu.memory_space<vmem>>, %arg7: memref<128x128xf32, #tpu.memory_space<vmem>>, %arg8: memref<1x128xf32, #tpu.memory_space<vmem>>, %arg9: memref<128x128xf32, #tpu.memory_space<vmem>>, %arg10: memref<1x128xf32, #tpu.memory_space<vmem>>, %arg11: memref<384x128xf32, #tpu.memory_space<vmem>>, %arg12: memref<1x128xf32, #tpu.memory_space<vmem>>, %arg13: memref<8x128xf32, #tpu.memory_space<vmem>>, %arg14: memref<8x2x128xf32, #tpu.memory_space<vmem>>, %arg15: memref<8x2x1xf32, #tpu.memory_space<vmem>>) attributes {dimension_semantics = [#tpu.dimension_semantics<parallel>, #tpu.dimension_semantics<arbitrary>], iteration_bounds = array<i64: 2, 2>, scalar_prefetch = 0 : i64, scratch_operands = 2 : i64, tpu.core_type = #tpu.core_type<tc>, window_params = [{transform_indices = @transform_0, window_bounds = array<i64: 8, 2, 128>}, {transform_indices = @transform_1, window_bounds = array<i64: 8, 128, 128>}, {transform_indices = @transform_2, window_bounds = array<i64: 8, 128>}, {pipeline_mode = #tpu.pipeline_mode<synchronous>, transform_indices = @transform_3, window_bounds = array<i64: 128, 128>}, {pipeline_mode = #tpu.pipeline_mode<synchronous>, transform_indices = @transform_4, window_bounds = array<i64: 1, 128>}, {pipeline_mode = #tpu.pipeline_mode<synchronous>, transform_indices = @transform_5, window_bounds = array<i64: 128, 128>}, {pipeline_mode = #tpu.pipeline_mode<synchronous>, transform_indices = @transform_6, window_bounds = array<i64: 1, 128>}, {pipeline_mode = #tpu.pipeline_mode<synchronous>, transform_indices = @transform_7, window_bounds = array<i64: 128, 128>}, {pipeline_mode = #tpu.pipeline_mode<synchronous>, transform_indices = @transform_8, window_bounds = array<i64: 1, 128>}, {pipeline_mode = #tpu.pipeline_mode<synchronous>, transform_indices = @transform_9, window_bounds = array<i64: 384, 128>}, {pipeline_mode = #tpu.pipeline_mode<synchronous>, transform_indices = @transform_10, window_bounds = array<i64: 1, 128>}, {transform_indices = @transform_11, window_bounds = array<i64: 8, 128>}]} {
    %c0_i32 = arith.constant 0 : i32
    %0 = arith.cmpi eq, %arg1, %c0_i32 : i32
    %1 = arith.extui %0 : i1 to i32
    %c0_i32_0 = arith.constant 0 : i32
    %2 = arith.cmpi ne, %1, %c0_i32_0 : i32
    scf.if %2 {
      %cst_21 = arith.constant 0.000000e+00 : f32
      %21 = vector.broadcast %cst_21 : f32 to vector<8x2x128xf32>
      %c0_22 = arith.constant 0 : index
      %c0_23 = arith.constant 0 : index
      %c0_24 = arith.constant 0 : index
      %22 = vector.load %arg14[%c0_22, %c0_23, %c0_24] : memref<8x2x128xf32, #tpu.memory_space<vmem>>, vector<8x2x128xf32>
      tpu.vector_store %arg14[%c0_22, %c0_23, %c0_24], %21 {strides = array<i32>} : memref<8x2x128xf32, #tpu.memory_space<vmem>>, vector<8x2x128xf32>,
      %cst_25 = arith.constant 0.000000e+00 : f32
      %23 = vector.broadcast %cst_25 : f32 to vector<8x2x1xf32>
      %c0_26 = arith.constant 0 : index
      %c0_27 = arith.constant 0 : index
      %c0_28 = arith.constant 0 : index
      %24 = vector.load %arg15[%c0_26, %c0_27, %c0_28] : memref<8x2x1xf32, #tpu.memory_space<vmem>>, vector<8x2x1xf32>
      tpu.vector_store %arg15[%c0_26, %c0_27, %c0_28], %23 {strides = array<i32>} : memref<8x2x1xf32, #tpu.memory_space<vmem>>, vector<8x2x1xf32>,
    } else {
    }
    %c0 = arith.constant 0 : index
    %c0_1 = arith.constant 0 : index
    %c0_2 = arith.constant 0 : index
    %3 = vector.load %arg2[%c0, %c0_1, %c0_2] : memref<8x2x128xbf16, #tpu.memory_space<vmem>>, vector<8x2x128xbf16>
    %c0_3 = arith.constant 0 : index
    %c0_4 = arith.constant 0 : index
    %c0_5 = arith.constant 0 : index
    %4 = vector.load %arg3[%c0_3, %c0_4, %c0_5] : memref<8x128x128xbf16, #tpu.memory_space<vmem>>, vector<8x128x128xbf16>
    %c0_6 = arith.constant 0 : index
    %c0_7 = arith.constant 0 : index
    %c0_8 = arith.constant 0 : index
    %5 = vector.load %arg14[%c0_6, %c0_7, %c0_8] : memref<8x2x128xf32, #tpu.memory_space<vmem>>, vector<8x2x128xf32>
    "tpu.trace_start"() <{level = 10 : i32, message = "bmt,bte->bme"}> : () -> ()
    %cst = arith.constant dense<0.000000e+00> : vector<8x2x128xf32>
    %6 = tpu.matmul %3, %4, %cst {dimension_numbers = #tpu.dot_dimension_numbers<[2], [1], [1], [2], [0, 0, 0, 1, 1, 2], [0], [0]>} : vector<8x2x128xbf16>, vector<8x128x128xbf16>, vector<8x2x128xf32> -> vector<8x2x128xf32>
    "tpu.trace_stop"() : () -> ()
    %7 = arith.addf %5, %6 : vector<8x2x128xf32>
    %c0_9 = arith.constant 0 : index
    %c0_10 = arith.constant 0 : index
    %c0_11 = arith.constant 0 : index
    %8 = vector.load %arg14[%c0_9, %c0_10, %c0_11] : memref<8x2x128xf32, #tpu.memory_space<vmem>>, vector<8x2x128xf32>
    tpu.vector_store %arg14[%c0_9, %c0_10, %c0_11], %7 {strides = array<i32>} : memref<8x2x128xf32, #tpu.memory_space<vmem>>, vector<8x2x128xf32>,
    %c0_12 = arith.constant 0 : index
    %c0_13 = arith.constant 0 : index
    %c0_14 = arith.constant 0 : index
    %9 = vector.load %arg15[%c0_12, %c0_13, %c0_14] : memref<8x2x1xf32, #tpu.memory_space<vmem>>, vector<8x2x1xf32>
    %cst_15 = arith.constant 0.000000e+00 : bf16
    %10 = vector.broadcast %cst_15 : bf16 to vector<8x2x128xbf16>
    %11 = arith.cmpf one, %3, %10 : vector<8x2x128xbf16>
    %12 = arith.extui %11 : vector<8x2x128xi1> to vector<8x2x128xi32>
    %13 = arith.sitofp %12 : vector<8x2x128xi32> to vector<8x2x128xf32>
    %cst_16 = arith.constant dense<0.000000e+00> : vector<8x2xf32>
    %14 = vector.multi_reduction <add>, %13, %cst_16 [2] : vector<8x2x128xf32> to vector<8x2xf32>
    %15 = vector.shape_cast %14 : vector<8x2xf32> to vector<8x2x1xf32>
    %16 = arith.addf %9, %15 : vector<8x2x1xf32>
    %c0_17 = arith.constant 0 : index
    %c0_18 = arith.constant 0 : index
    %c0_19 = arith.constant 0 : index
    %17 = vector.load %arg15[%c0_17, %c0_18, %c0_19] : memref<8x2x1xf32, #tpu.memory_space<vmem>>, vector<8x2x1xf32>
    tpu.vector_store %arg15[%c0_17, %c0_18, %c0_19], %16 {strides = array<i32>} : memref<8x2x1xf32, #tpu.memory_space<vmem>>, vector<8x2x1xf32>,
    %c1_i32 = arith.constant 1 : i32
    %18 = arith.cmpi eq, %arg1, %c1_i32 : i32
    %19 = arith.extui %18 : i1 to i32
    %c0_i32_20 = arith.constant 0 : i32
    %20 = arith.cmpi ne, %19, %c0_i32_20 : i32
    scf.if %20 {
      %c0_21 = arith.constant 0 : index
      %c0_22 = arith.constant 0 : index
      %c0_23 = arith.constant 0 : index
      %21 = vector.load %arg14[%c0_21, %c0_22, %c0_23] : memref<8x2x128xf32, #tpu.memory_space<vmem>>, vector<8x2x128xf32>
      %c0_24 = arith.constant 0 : index
      %c0_25 = arith.constant 0 : index
      %c0_26 = arith.constant 0 : index
      %22 = vector.load %arg15[%c0_24, %c0_25, %c0_26] : memref<8x2x1xf32, #tpu.memory_space<vmem>>, vector<8x2x1xf32>
      %23 = vector.broadcast %22 : vector<8x2x1xf32> to vector<8x2x128xf32>
      %24 = arith.divf %21, %23 : vector<8x2x128xf32>
      %25 = vector.extract_strided_slice %24 {offsets = [0, 0, 0], sizes = [8, 1, 128], strides = [1, 1, 1]} : vector<8x2x128xf32> to vector<8x1x128xf32>
      %26 = vector.shape_cast %25 : vector<8x1x128xf32> to vector<8x128xf32>
      %27 = vector.extract_strided_slice %24 {offsets = [0, 1, 0], sizes = [8, 1, 128], strides = [1, 1, 1]} : vector<8x2x128xf32> to vector<8x1x128xf32>
      %28 = vector.shape_cast %27 : vector<8x1x128xf32> to vector<8x128xf32>
      %c0_27 = arith.constant 0 : index
      %c0_28 = arith.constant 0 : index
      %29 = vector.load %arg4[%c0_27, %c0_28] : memref<8x128xf32, #tpu.memory_space<vmem>>, vector<8x128xf32>
      %30 = math.tanh %29 : vector<8x128xf32>
      %c0_29 = arith.constant 0 : index
      %c0_30 = arith.constant 0 : index
      %31 = vector.load %arg5[%c0_29, %c0_30] : memref<128x128xf32, #tpu.memory_space<vmem>>, vector<128x128xf32>
      %cst_31 = arith.constant dense<0.000000e+00> : vector<8x128xf32>
      %32 = tpu.matmul %30, %31, %cst_31 {dimension_numbers = #tpu.dot_dimension_numbers<[1], [0], [0], [1], [0, 0, 1, 1], [], []>} : vector<8x128xf32>, vector<128x128xf32>, vector<8x128xf32> -> vector<8x128xf32>
      %c0_32 = arith.constant 0 : index
      %c0_33 = arith.constant 0 : index
      %33 = vector.load %arg6[%c0_32, %c0_33] : memref<1x128xf32, #tpu.memory_space<vmem>>, vector<1x128xf32>
      %34 = vector.broadcast %33 : vector<1x128xf32> to vector<8x128xf32>
      %35 = arith.addf %32, %34 : vector<8x128xf32>
      %36 = math.tanh %26 : vector<8x128xf32>
      %c0_34 = arith.constant 0 : index
      %c0_35 = arith.constant 0 : index
      %37 = vector.load %arg7[%c0_34, %c0_35] : memref<128x128xf32, #tpu.memory_space<vmem>>, vector<128x128xf32>
      %cst_36 = arith.constant dense<0.000000e+00> : vector<8x128xf32>
      %38 = tpu.matmul %36, %37, %cst_36 {dimension_numbers = #tpu.dot_dimension_numbers<[1], [0], [0], [1], [0, 0, 1, 1], [], []>} : vector<8x128xf32>, vector<128x128xf32>, vector<8x128xf32> -> vector<8x128xf32>
      %c0_37 = arith.constant 0 : index
      %c0_38 = arith.constant 0 : index
      %39 = vector.load %arg8[%c0_37, %c0_38] : memref<1x128xf32, #tpu.memory_space<vmem>>, vector<1x128xf32>
      %40 = vector.broadcast %39 : vector<1x128xf32> to vector<8x128xf32>
      %41 = arith.addf %38, %40 : vector<8x128xf32>
      %42 = math.tanh %28 : vector<8x128xf32>
      %c0_39 = arith.constant 0 : index
      %c0_40 = arith.constant 0 : index
      %43 = vector.load %arg9[%c0_39, %c0_40] : memref<128x128xf32, #tpu.memory_space<vmem>>, vector<128x128xf32>
      %cst_41 = arith.constant dense<0.000000e+00> : vector<8x128xf32>
      %44 = tpu.matmul %42, %43, %cst_41 {dimension_numbers = #tpu.dot_dimension_numbers<[1], [0], [0], [1], [0, 0, 1, 1], [], []>} : vector<8x128xf32>, vector<128x128xf32>, vector<8x128xf32> -> vector<8x128xf32>
      %c0_42 = arith.constant 0 : index
      %c0_43 = arith.constant 0 : index
      %45 = vector.load %arg10[%c0_42, %c0_43] : memref<1x128xf32, #tpu.memory_space<vmem>>, vector<1x128xf32>
      %46 = vector.broadcast %45 : vector<1x128xf32> to vector<8x128xf32>
      %47 = arith.addf %44, %46 : vector<8x128xf32>
      %48 = tpu.concatenate %35, %41, %47 in 1 : vector<8x128xf32>, vector<8x128xf32>, vector<8x128xf32> -> vector<8x384xf32>
      %cst_44 = arith.constant dense<0.000000e+00> : vector<8xf32>
      %49 = vector.multi_reduction <add>, %48, %cst_44 [1] : vector<8x384xf32> to vector<8xf32>
      %50 = vector.shape_cast %49 : vector<8xf32> to vector<8x1xf32>
      %cst_45 = arith.constant 3.840000e+02 : f32
      %51 = vector.broadcast %cst_45 : f32 to vector<8x1xf32>
      %52 = arith.divf %50, %51 : vector<8x1xf32>
      %53 = vector.broadcast %52 : vector<8x1xf32> to vector<8x384xf32>
      %54 = arith.subf %48, %53 : vector<8x384xf32>
      %55 = arith.mulf %54, %54 : vector<8x384xf32>
      %cst_46 = arith.constant dense<0.000000e+00> : vector<8xf32>
      %56 = vector.multi_reduction <add>, %55, %cst_46 [1] : vector<8x384xf32> to vector<8xf32>
      %57 = vector.shape_cast %56 : vector<8xf32> to vector<8x1xf32>
      %cst_47 = arith.constant 3.840000e+02 : f32
      %58 = vector.broadcast %cst_47 : f32 to vector<8x1xf32>
      %59 = arith.divf %57, %58 : vector<8x1xf32>
      %60 = vector.broadcast %52 : vector<8x1xf32> to vector<8x384xf32>
      %61 = arith.subf %48, %60 : vector<8x384xf32>
      %cst_48 = arith.constant 9.99999974E-6 : f32
      %62 = vector.broadcast %cst_48 : f32 to vector<8x1xf32>
      %63 = arith.addf %59, %62 : vector<8x1xf32>
      %64 = math.rsqrt %63 : vector<8x1xf32>
      %65 = vector.broadcast %64 : vector<8x1xf32> to vector<8x384xf32>
      %66 = arith.mulf %61, %65 : vector<8x384xf32>
      %c0_49 = arith.constant 0 : index
      %c0_50 = arith.constant 0 : index
      %67 = vector.load %arg11[%c0_49, %c0_50] : memref<384x128xf32, #tpu.memory_space<vmem>>, vector<384x128xf32>
      %cst_51 = arith.constant dense<0.000000e+00> : vector<8x128xf32>
      %68 = tpu.matmul %66, %67, %cst_51 {dimension_numbers = #tpu.dot_dimension_numbers<[1], [0], [0], [1], [0, 0, 1, 1], [], []>} : vector<8x384xf32>, vector<384x128xf32>, vector<8x128xf32> -> vector<8x128xf32>
      %c0_52 = arith.constant 0 : index
      %c0_53 = arith.constant 0 : index
      %69 = vector.load %arg12[%c0_52, %c0_53] : memref<1x128xf32, #tpu.memory_space<vmem>>, vector<1x128xf32>
      %70 = vector.broadcast %69 : vector<1x128xf32> to vector<8x128xf32>
      %71 = arith.addf %68, %70 : vector<8x128xf32>
      %c0_54 = arith.constant 0 : index
      %c0_55 = arith.constant 0 : index
      %72 = vector.load %arg13[%c0_54, %c0_55] : memref<8x128xf32, #tpu.memory_space<vmem>>, vector<8x128xf32>
      tpu.vector_store %arg13[%c0_54, %c0_55], %71 {strides = array<i32>} : memref<8x128xf32, #tpu.memory_space<vmem>>, vector<8x128xf32>,
    } else {
    }
    return
  }
  func.func @transform_0(%arg0: i32, %arg1: i32) -> (i32, i32, i32) {
    %c0_i32 = arith.constant 0 : i32
    %c0_i32_0 = arith.constant 0 : i32
    return %arg0, %c0_i32, %arg1 : i32, i32, i32
  }
  func.func @transform_1(%arg0: i32, %arg1: i32) -> (i32, i32, i32) {
    %c0_i32 = arith.constant 0 : i32
    %c0_i32_0 = arith.constant 0 : i32
    return %arg0, %arg1, %c0_i32 : i32, i32, i32
  }
  func.func @transform_2(%arg0: i32, %arg1: i32) -> (i32, i32) {
    %c0_i32 = arith.constant 0 : i32
    %c0_i32_0 = arith.constant 0 : i32
    return %arg0, %c0_i32 : i32, i32
  }
  func.func @transform_3(%arg0: i32, %arg1: i32) -> (i32, i32) {
    %c0_i32 = arith.constant 0 : i32
    %c0_i32_0 = arith.constant 0 : i32
    %c0_i32_1 = arith.constant 0 : i32
    return %c0_i32, %c0_i32_0 : i32, i32
  }
  func.func @transform_4(%arg0: i32, %arg1: i32) -> (i32, i32) {
    %c0_i32 = arith.constant 0 : i32
    %c0_i32_0 = arith.constant 0 : i32
    %c0_i32_1 = arith.constant 0 : i32
    return %c0_i32, %c0_i32_0 : i32, i32
  }
  func.func @transform_5(%arg0: i32, %arg1: i32) -> (i32, i32) {
    %c0_i32 = arith.constant 0 : i32
    %c0_i32_0 = arith.constant 0 : i32
    %c0_i32_1 = arith.constant 0 : i32
    return %c0_i32, %c0_i32_0 : i32, i32
  }
  func.func @transform_6(%arg0: i32, %arg1: i32) -> (i32, i32) {
    %c0_i32 = arith.constant 0 : i32
    %c0_i32_0 = arith.constant 0 : i32
    %c0_i32_1 = arith.constant 0 : i32
    return %c0_i32, %c0_i32_0 : i32, i32
  }
  func.func @transform_7(%arg0: i32, %arg1: i32) -> (i32, i32) {
    %c0_i32 = arith.constant 0 : i32
    %c0_i32_0 = arith.constant 0 : i32
    %c0_i32_1 = arith.constant 0 : i32
    return %c0_i32, %c0_i32_0 : i32, i32
  }
  func.func @transform_8(%arg0: i32, %arg1: i32) -> (i32, i32) {
    %c0_i32 = arith.constant 0 : i32
    %c0_i32_0 = arith.constant 0 : i32
    %c0_i32_1 = arith.constant 0 : i32
    return %c0_i32, %c0_i32_0 : i32, i32
  }
  func.func @transform_9(%arg0: i32, %arg1: i32) -> (i32, i32) {
    %c0_i32 = arith.constant 0 : i32
    %c0_i32_0 = arith.constant 0 : i32
    %c0_i32_1 = arith.constant 0 : i32
    return %c0_i32, %c0_i32_0 : i32, i32
  }
  func.func @transform_10(%arg0: i32, %arg1: i32) -> (i32, i32) {
    %c0_i32 = arith.constant 0 : i32
    %c0_i32_0 = arith.constant 0 : i32
    %c0_i32_1 = arith.constant 0 : i32
    return %c0_i32, %c0_i32_0 : i32, i32
  }
  func.func @transform_11(%arg0: i32, %arg1: i32) -> (i32, i32) {
    %c0_i32 = arith.constant 0 : i32
    %c0_i32_0 = arith.constant 0 : i32
    return %arg0, %c0_i32 : i32, i32
  }
}

</mosaic_0001>

<llo_original>
// kernel: tpu_custom_call.1
$region0: #{tpu_custom_call.1}
  #allocation0 [shape = 'u32[]', space=smem, size = 0x4, offset = 0x4, fixed_abs, tag = 'smem constant byte address 0x4 - core index']
  #allocation1 [shape = 'u32[144,128]{1,0:T(1,128)}', space=vmem, size = 0x12000, scoped, tag = 'internal scratch']
  #allocation2 [shape = 'f32[8,2,128]{2,1,0:T(2,128)}', space=vmem, size = 0x2000, scoped, tag = 'scratch operand']
  #allocation3 [shape = 'f32[8,2,1]{2,1,0:T(2,128)}', space=vmem, size = 0x2000, scoped, tag = 'scratch operand']
  #allocation17 [shape = 's32[]', space=sflag, size = 0x4, offset = 0, fixed_abs, tag = 'sflag constant byte address 0x0 - dummy sync flag']
  %s0 = inlined_call_operand.hbm [shape: bf16[16,2,256], index: 0, kind: input, shape index: {}]
  %s1 = inlined_call_operand.hbm [shape: bf16[16,256,128], index: 1, kind: input, shape index: {}]
  %s2 = inlined_call_operand.hbm [shape: f32[16,128], index: 2, kind: input, shape index: {}]
  %s3 = inlined_call_operand.hbm [shape: f32[128,128], index: 3, kind: input, shape index: {}]
  %s4 = inlined_call_operand.vmem [shape: f32[1,128], index: 4, kind: input, shape index: {}]
  %s5 = inlined_call_operand.hbm [shape: f32[128,128], index: 5, kind: input, shape index: {}]
  %s6 = inlined_call_operand.vmem [shape: f32[1,128], index: 6, kind: input, shape index: {}]
  %s7 = inlined_call_operand.hbm [shape: f32[128,128], index: 7, kind: input, shape index: {}]
  %s8 = inlined_call_operand.vmem [shape: f32[1,128], index: 8, kind: input, shape index: {}]
  %s9 = inlined_call_operand.hbm [shape: f32[384,128], index: 9, kind: input, shape index: {}]
  %s10 = inlined_call_operand.vmem [shape: f32[1,128], index: 10, kind: input, shape index: {}]
  %s11 = inlined_call_operand.hbm [shape: f32[16,128], index: 11, kind: output, shape index: {}]
  %s12 = sld [smem:[#allocation0]]
  $region113: #{tpu_custom_call.1} parent=0
    _
  %s14 = ssub.s32 1, %s12
  %s15 = scalar_select 0, %s14, %s12
  $region1: #{tpu_custom_call.1} parent=0
    #allocation4 [shape = 'u8[8192]{0}', space=vmem, size = 0x2000, scoped, tag = 'input window, operand 0']
    #allocation5 [shape = 's32[2]{0}', space=sflag, size = 0x8, scoped, tag = 'scoped memory for tpu_custom_call.1']
    #allocation6 [shape = 's32[2]{0}', space=sflag, size = 0x8, scoped, tag = 'scoped memory for tpu_custom_call.1']
    #allocation7 [shape = 'u8[524288]{0}', space=vmem, size = 0x80000, scoped, tag = 'input window, operand 1']
    #allocation8 [shape = 's32[2]{0}', space=sflag, size = 0x8, scoped, tag = 'scoped memory for tpu_custom_call.1']
    #allocation9 [shape = 'u8[8192]{0}', space=vmem, size = 0x2000, scoped, tag = 'input window, operand 2']
    #allocation10 [shape = 'u8[65536]{0}', space=vmem, size = 0x10000, scoped, tag = 'input window, operand 3, single buffered']
    #allocation11 [shape = 's32[1]{0}', space=sflag, size = 0x4, scoped, tag = 'scoped memory for tpu_custom_call.1']
    #allocation12 [shape = 'u8[65536]{0}', space=vmem, size = 0x10000, scoped, tag = 'input window, operand 5, single buffered']
    #allocation13 [shape = 'u8[65536]{0}', space=vmem, size = 0x10000, scoped, tag = 'input window, operand 7, single buffered']
    #allocation14 [shape = 's32[1]{0}', space=sflag, size = 0x4, scoped, tag = 'scoped memory for tpu_custom_call.1']
    #allocation15 [shape = 'u8[196608]{0}', space=vmem, size = 0x30000, scoped, tag = 'input window, operand 9, single buffered']
    #allocation16 [shape = 'u8[8192]{0}', space=vmem, size = 0x2000, scoped, tag = 'output window, operand 0']
    %16 = vsyncpa [#allocation5], 0
    %s17 = scalar_lea.sflag [#allocation5], 1
    %18 = vsyncpa %s17, 0
    %19 = vsyncpa [#allocation8], 0
    %s20 = scalar_lea.sflag [#allocation8], 1
    %21 = vsyncpa %s20, 0
    %22 = vsyncpa [#allocation11], 0
    %23 = vsyncpa [#allocation14], 0
    %24 = vsyncpa [#allocation6], 0
    %s25 = scalar_lea.sflag [#allocation6], 1
    %26 = vsyncpa %s25, 0
    loop: start=0, step=1, limit=6
    $region2: #{tpu_custom_call.1} parent=1 // loop_pre_header
      _
    $region3: #{tpu_custom_call.1} parent=1 // loop_header
      %s28 = sphi 0, %s32
      %p29 = scmp.ge.s32.totalorder %s28, 6
      %s35 = sphi 0, %s47
      %s36 = sphi 0, %s43
      %s37 = sphi 0, %s35
      %s38 = sphi 0, %s36
      %s39 = sphi 0, %s37
      %s40 = sphi 0, %s38
      %s52 = sphi 0, %s54
      %s55 = sphi 0, %s52
      %s56 = sphi 0, %s55
      %s72 = sphi 0, %s56
      %s80 = sphi 0, %s82
      %s83 = sphi 0, %s80
      %s84 = sphi 0, %s83
      %s100 = sphi 0, %s84
      %s106 = sphi 0, %s108
      %s109 = sphi 0, %s106
      %s110 = sphi 0, %s109
      %s126 = sphi 0, %s110
      %s130 = sphi 0, %s130
      %s132 = sphi 0, %s130
      %s133 = sphi 0, %s132
      %s147 = sphi 0, %s133
      %s151 = sphi 0, %s151
      %s153 = sphi 0, %s151
      %s154 = sphi 0, %s153
      %s168 = sphi 0, %s154
      %s172 = sphi 0, %s172
      %s174 = sphi 0, %s172
      %s175 = sphi 0, %s174
      %s189 = sphi 0, %s175
      %s193 = sphi 0, %s193
      %s195 = sphi 0, %s193
      %s196 = sphi 0, %s195
      %s210 = sphi 0, %s196
      %s214 = sphi 0, %s214
      %s216 = sphi 0, %s214
      %s217 = sphi 0, %s216
      %s231 = sphi 0, %s217
      %s235 = sphi 0, %s235
      %s237 = sphi 0, %s235
      %s238 = sphi 0, %s237
      %s252 = sphi 0, %s238
      %s256 = sphi 0, %s256
      %s258 = sphi 0, %s256
      %s259 = sphi 0, %s258
      %s273 = sphi 0, %s259
      %s277 = sphi 0, %s277
      %s279 = sphi 0, %s277
      %s280 = sphi 0, %s279
      %s294 = sphi 0, %s280
      %s300 = sphi 0, %s302
      %s303 = sphi 0, %s300
      %s304 = sphi 0, %s303
      %s320 = sphi 0, %s304
    $region4: #{tpu_custom_call.1} parent=1 // loop_header_branch
      %31 = sbr.rel (%p29) target = $region8
    $region5: #{tpu_custom_call.1} parent=1 // loop_body
      %s33 = ssub.s32 %s28, 1
      %s34 = ssub.s32 %s28, 2
      %s41 = sadd.s32 1, %s36
      %p42 = scmp.ge.s32.totalorder %s41, 2
      %s43 = scalar_select %p42, 0, %s41
      %s44 = sadd.s32 1, %s35
      %s45 = scalar_select %p42, %s44, %s35
      %p46 = scmp.ge.s32.totalorder %s45, 2
      %s47 = scalar_select %p46, 0, %s45
      %s48 = ssub.s32 %s35, %s47
      %s49 = ssub.s32 %s36, %s43
      %s50 = sor.u32 %s48, %s49
      %p51 = scmp.eq.s32.totalorder %s50, 0
      %s53 = sadd.s32 %s52, 1
      %s54 = scalar_select %p51, %s52, %s53
      %p57 = pneg %p51
      %p58 = scmp.eq.s32.totalorder %s28, 3
      %p59 = por %p57, %p58
      %p60 = scmp.ne.s32.totalorder %s52, %s55
      %p61 = scmp.eq.s32.totalorder %s28, 0
      %p62 = por %p60, %p61
      %p63 = scmp.ne.s32.totalorder %s52, %s55
      %p64 = scmp.eq.s32.totalorder %s33, 3
      %p65 = por %p63, %p64
      %p66 = scmp.ne.s32.totalorder %s55, %s56
      %p67 = scmp.eq.s32.totalorder %s33, 0
      %p68 = por %p66, %p67
      %p69 = scmp.ne.s32.totalorder %s55, %s56
      %p70 = scmp.eq.s32.totalorder %s34, 3
      %p71 = por %p69, %p70
      %p73 = scmp.ne.s32.totalorder %s56, %s72
      %p74 = scmp.eq.s32.totalorder %s34, 0
      %p75 = por %p73, %p74
      %s76 = ssub.s32 %s35, %s47
      %s77 = ssub.s32 %s36, %s43
      %s78 = sor.u32 %s76, %s77
      %p79 = scmp.eq.s32.totalorder %s78, 0
      %s81 = sadd.s32 %s80, 1
      %s82 = scalar_select %p79, %s80, %s81
      %p85 = pneg %p79
      %p86 = scmp.eq.s32.totalorder %s28, 3
      %p87 = por %p85, %p86
      %p88 = scmp.ne.s32.totalorder %s80, %s83
      %p89 = scmp.eq.s32.totalorder %s28, 0
      %p90 = por %p88, %p89
      %p91 = scmp.ne.s32.totalorder %s80, %s83
      %p92 = scmp.eq.s32.totalorder %s33, 3
      %p93 = por %p91, %p92
      %p94 = scmp.ne.s32.totalorder %s83, %s84
      %p95 = scmp.eq.s32.totalorder %s33, 0
      %p96 = por %p94, %p95
      %p97 = scmp.ne.s32.totalorder %s83, %s84
      %p98 = scmp.eq.s32.totalorder %s34, 3
      %p99 = por %p97, %p98
      %p101 = scmp.ne.s32.totalorder %s84, %s100
      %p102 = scmp.eq.s32.totalorder %s34, 0
      %p103 = por %p101, %p102
      %s104 = ssub.s32 %s35, %s47
      %p105 = scmp.eq.s32.totalorder %s104, 0
      %s107 = sadd.s32 %s106, 1
      %s108 = scalar_select %p105, %s106, %s107
      %p111 = pneg %p105
      %p112 = scmp.eq.s32.totalorder %s28, 3
      %p113 = por %p111, %p112
      %p114 = scmp.ne.s32.totalorder %s106, %s109
      %p115 = scmp.eq.s32.totalorder %s28, 0
      %p116 = por %p114, %p115
      %p117 = scmp.ne.s32.totalorder %s106, %s109
      %p118 = scmp.eq.s32.totalorder %s33, 3
      %p119 = por %p117, %p118
      %p120 = scmp.ne.s32.totalorder %s109, %s110
      %p121 = scmp.eq.s32.totalorder %s33, 0
      %p122 = por %p120, %p121
      %p123 = scmp.ne.s32.totalorder %s109, %s110
      %p124 = scmp.eq.s32.totalorder %s34, 3
      %p125 = por %p123, %p124
      %p127 = scmp.ne.s32.totalorder %s110, %s126
      %p128 = scmp.eq.s32.totalorder %s34, 0
      %p129 = por %p127, %p128
      %s131 = sadd.s32 %s130, 1
      %p134 = scmp.eq.s32.totalorder %s28, 3
      %p135 = scmp.ne.s32.totalorder %s130, %s132
      %p136 = scmp.eq.s32.totalorder %s28, 0
      %p137 = por %p135, %p136
      %p138 = scmp.ne.s32.totalorder %s130, %s132
      %p139 = scmp.eq.s32.totalorder %s33, 3
      %p140 = por %p138, %p139
      %p141 = scmp.ne.s32.totalorder %s132, %s133
      %p142 = scmp.eq.s32.totalorder %s33, 0
      %p143 = por %p141, %p142
      %p144 = scmp.ne.s32.totalorder %s132, %s133
      %p145 = scmp.eq.s32.totalorder %s34, 3
      %p146 = por %p144, %p145
      %p148 = scmp.ne.s32.totalorder %s133, %s147
      %p149 = scmp.eq.s32.totalorder %s34, 0
      %p150 = por %p148, %p149
      %s152 = sadd.s32 %s151, 1
      %p155 = scmp.eq.s32.totalorder %s28, 3
      %p156 = scmp.ne.s32.totalorder %s151, %s153
      %p157 = scmp.eq.s32.totalorder %s28, 0
      %p158 = por %p156, %p157
      %p159 = scmp.ne.s32.totalorder %s151, %s153
      %p160 = scmp.eq.s32.totalorder %s33, 3
      %p161 = por %p159, %p160
      %p162 = scmp.ne.s32.totalorder %s153, %s154
      %p163 = scmp.eq.s32.totalorder %s33, 0
      %p164 = por %p162, %p163
      %p165 = scmp.ne.s32.totalorder %s153, %s154
      %p166 = scmp.eq.s32.totalorder %s34, 3
      %p167 = por %p165, %p166
      %p169 = scmp.ne.s32.totalorder %s154, %s168
      %p170 = scmp.eq.s32.totalorder %s34, 0
      %p171 = por %p169, %p170
      %s173 = sadd.s32 %s172, 1
      %p176 = scmp.eq.s32.totalorder %s28, 3
      %p177 = scmp.ne.s32.totalorder %s172, %s174
      %p178 = scmp.eq.s32.totalorder %s28, 0
      %p179 = por %p177, %p178
      %p180 = scmp.ne.s32.totalorder %s172, %s174
      %p181 = scmp.eq.s32.totalorder %s33, 3
      %p182 = por %p180, %p181
      %p183 = scmp.ne.s32.totalorder %s174, %s175
      %p184 = scmp.eq.s32.totalorder %s33, 0
      %p185 = por %p183, %p184
      %p186 = scmp.ne.s32.totalorder %s174, %s175
      %p187 = scmp.eq.s32.totalorder %s34, 3
      %p188 = por %p186, %p187
      %p190 = scmp.ne.s32.totalorder %s175, %s189
      %p191 = scmp.eq.s32.totalorder %s34, 0
      %p192 = por %p190, %p191
      %s194 = sadd.s32 %s193, 1
      %p197 = scmp.eq.s32.totalorder %s28, 3
      %p198 = scmp.ne.s32.totalorder %s193, %s195
      %p199 = scmp.eq.s32.totalorder %s28, 0
      %p200 = por %p198, %p199
      %p201 = scmp.ne.s32.totalorder %s193, %s195
      %p202 = scmp.eq.s32.totalorder %s33, 3
      %p203 = por %p201, %p202
      %p204 = scmp.ne.s32.totalorder %s195, %s196
      %p205 = scmp.eq.s32.totalorder %s33, 0
      %p206 = por %p204, %p205
      %p207 = scmp.ne.s32.totalorder %s195, %s196
      %p208 = scmp.eq.s32.totalorder %s34, 3
      %p209 = por %p207, %p208
      %p211 = scmp.ne.s32.totalorder %s196, %s210
      %p212 = scmp.eq.s32.totalorder %s34, 0
      %p213 = por %p211, %p212
      %s215 = sadd.s32 %s214, 1
      %p218 = scmp.eq.s32.totalorder %s28, 3
      %p219 = scmp.ne.s32.totalorder %s214, %s216
      %p220 = scmp.eq.s32.totalorder %s28, 0
      %p221 = por %p219, %p220
      %p222 = scmp.ne.s32.totalorder %s214, %s216
      %p223 = scmp.eq.s32.totalorder %s33, 3
      %p224 = por %p222, %p223
      %p225 = scmp.ne.s32.totalorder %s216, %s217
      %p226 = scmp.eq.s32.totalorder %s33, 0
      %p227 = por %p225, %p226
      %p228 = scmp.ne.s32.totalorder %s216, %s217
      %p229 = scmp.eq.s32.totalorder %s34, 3
      %p230 = por %p228, %p229
      %p232 = scmp.ne.s32.totalorder %s217, %s231
      %p233 = scmp.eq.s32.totalorder %s34, 0
      %p234 = por %p232, %p233
      %s236 = sadd.s32 %s235, 1
      %p239 = scmp.eq.s32.totalorder %s28, 3
      %p240 = scmp.ne.s32.totalorder %s235, %s237
      %p241 = scmp.eq.s32.totalorder %s28, 0
      %p242 = por %p240, %p241
      %p243 = scmp.ne.s32.totalorder %s235, %s237
      %p244 = scmp.eq.s32.totalorder %s33, 3
      %p245 = por %p243, %p244
      %p246 = scmp.ne.s32.totalorder %s237, %s238
      %p247 = scmp.eq.s32.totalorder %s33, 0
      %p248 = por %p246, %p247
      %p249 = scmp.ne.s32.totalorder %s237, %s238
      %p250 = scmp.eq.s32.totalorder %s34, 3
      %p251 = por %p249, %p250
      %p253 = scmp.ne.s32.totalorder %s238, %s252
      %p254 = scmp.eq.s32.totalorder %s34, 0
      %p255 = por %p253, %p254
      %s257 = sadd.s32 %s256, 1
      %p260 = scmp.eq.s32.totalorder %s28, 3
      %p261 = scmp.ne.s32.totalorder %s256, %s258
      %p262 = scmp.eq.s32.totalorder %s28, 0
      %p263 = por %p261, %p262
      %p264 = scmp.ne.s32.totalorder %s256, %s258
      %p265 = scmp.eq.s32.totalorder %s33, 3
      %p266 = por %p264, %p265
      %p267 = scmp.ne.s32.totalorder %s258, %s259
      %p268 = scmp.eq.s32.totalorder %s33, 0
      %p269 = por %p267, %p268
      %p270 = scmp.ne.s32.totalorder %s258, %s259
      %p271 = scmp.eq.s32.totalorder %s34, 3
      %p272 = por %p270, %p271
      %p274 = scmp.ne.s32.totalorder %s259, %s273
      %p275 = scmp.eq.s32.totalorder %s34, 0
      %p276 = por %p274, %p275
      %s278 = sadd.s32 %s277, 1
      %p281 = scmp.eq.s32.totalorder %s28, 3
      %p282 = scmp.ne.s32.totalorder %s277, %s279
      %p283 = scmp.eq.s32.totalorder %s28, 0
      %p284 = por %p282, %p283
      %p285 = scmp.ne.s32.totalorder %s277, %s279
      %p286 = scmp.eq.s32.totalorder %s33, 3
      %p287 = por %p285, %p286
      %p288 = scmp.ne.s32.totalorder %s279, %s280
      %p289 = scmp.eq.s32.totalorder %s33, 0
      %p290 = por %p288, %p289
      %p291 = scmp.ne.s32.totalorder %s279, %s280
      %p292 = scmp.eq.s32.totalorder %s34, 3
      %p293 = por %p291, %p292
      %p295 = scmp.ne.s32.totalorder %s280, %s294
      %p296 = scmp.eq.s32.totalorder %s34, 0
      %p297 = por %p295, %p296
      %s298 = ssub.s32 %s35, %s47
      %p299 = scmp.eq.s32.totalorder %s298, 0
      %s301 = sadd.s32 %s300, 1
      %s302 = scalar_select %p299, %s300, %s301
      %p305 = pneg %p299
      %p306 = scmp.eq.s32.totalorder %s28, 3
      %p307 = por %p305, %p306
      %p308 = scmp.ne.s32.totalorder %s300, %s303
      %p309 = scmp.eq.s32.totalorder %s28, 0
      %p310 = por %p308, %p309
      %p311 = scmp.ne.s32.totalorder %s300, %s303
      %p312 = scmp.eq.s32.totalorder %s33, 3
      %p313 = por %p311, %p312
      %p314 = scmp.ne.s32.totalorder %s303, %s304
      %p315 = scmp.eq.s32.totalorder %s33, 0
      %p316 = por %p314, %p315
      %p317 = scmp.ne.s32.totalorder %s303, %s304
      %p318 = scmp.eq.s32.totalorder %s34, 3
      %p319 = por %p317, %p318
      %p321 = scmp.ne.s32.totalorder %s304, %s320
      %p322 = scmp.eq.s32.totalorder %s34, 0
      %p323 = por %p321, %p322
      %p324 = scmp.le.s32.totalorder 1, %s28
      %p325 = scmp.lt.s32.totalorder %s28, 5
      %p326 = pnand %p324, %p325
      %p327 = pneg %p326
      // Predicated region
      $region9: #{tpu_custom_call.1} parent=5 // pred_check
        _
      $region10: #{tpu_custom_call.1} parent=5 // pred_check_branch
        %329 = sbr.rel (%p326) target = $region12
      $region11: #{tpu_custom_call.1} parent=5 // pred_region
        %s330 = ssub.s32 %s28, 1
        // Predicated region
        $region13: #{tpu_custom_call.1} parent=11 // pred_check
          %p331 = pneg %p143
        $region14: #{tpu_custom_call.1} parent=11 // pred_check_branch
          %333 = sbr.rel (%p331) target = $region16
        $region15: #{tpu_custom_call.1} parent=11 // pred_region
          %s335 = ssub.s32 2048, 2048
          %336 = vsyncadd [#allocation11], %s335
          %s337 = sshll.u32 [#allocation10], 4
          %s338 = int_to_ptr.vmem [resolvable:$true] %s337
          %343 = dma.hbm_to_vmem [thread:$0]  %s3, 2048, %s338, [#allocation11], 128, 128, 8
        $region16: #{tpu_custom_call.1} parent=11 // pred_fallthru
          _
        // Predicated region
        $region17: #{tpu_custom_call.1} parent=11 // pred_check
          %p344 = pneg %p164
        $region18: #{tpu_custom_call.1} parent=11 // pred_check_branch
          %346 = sbr.rel (%p344) target = $region20
        $region19: #{tpu_custom_call.1} parent=11 // pred_region
          _
        $region20: #{tpu_custom_call.1} parent=11 // pred_fallthru
          _
        // Predicated region
        $region21: #{tpu_custom_call.1} parent=11 // pred_check
          %p347 = pneg %p185
        $region22: #{tpu_custom_call.1} parent=11 // pred_check_branch
          %349 = sbr.rel (%p347) target = $region24
        $region23: #{tpu_custom_call.1} parent=11 // pred_region
          %s351 = ssub.s32 2048, 2048
          %352 = vsyncadd [#allocation11], %s351
          %s353 = sshll.u32 [#allocation12], 4
          %s354 = int_to_ptr.vmem [resolvable:$true] %s353
          %359 = dma.hbm_to_vmem [thread:$0]  %s5, 2048, %s354, [#allocation11], 128, 128, 8
        $region24: #{tpu_custom_call.1} parent=11 // pred_fallthru
          _
        // Predicated region
        $region25: #{tpu_custom_call.1} parent=11 // pred_check
          %p360 = pneg %p206
        $region26: #{tpu_custom_call.1} parent=11 // pred_check_branch
          %362 = sbr.rel (%p360) target = $region28
        $region27: #{tpu_custom_call.1} parent=11 // pred_region
          _
        $region28: #{tpu_custom_call.1} parent=11 // pred_fallthru
          _
        // Predicated region
        $region29: #{tpu_custom_call.1} parent=11 // pred_check
          %p363 = pneg %p227
        $region30: #{tpu_custom_call.1} parent=11 // pred_check_branch
          %365 = sbr.rel (%p363) target = $region32
        $region31: #{tpu_custom_call.1} parent=11 // pred_region
          %s367 = ssub.s32 2048, 2048
          %368 = vsyncadd [#allocation14], %s367
          %s369 = sshll.u32 [#allocation13], 4
          %s370 = int_to_ptr.vmem [resolvable:$true] %s369
          %375 = dma.hbm_to_vmem [thread:$0]  %s7, 2048, %s370, [#allocation14], 128, 128, 8
        $region32: #{tpu_custom_call.1} parent=11 // pred_fallthru
          _
        // Predicated region
        $region33: #{tpu_custom_call.1} parent=11 // pred_check
          %p376 = pneg %p248
        $region34: #{tpu_custom_call.1} parent=11 // pred_check_branch
          %378 = sbr.rel (%p376) target = $region36
        $region35: #{tpu_custom_call.1} parent=11 // pred_region
          _
        $region36: #{tpu_custom_call.1} parent=11 // pred_fallthru
          _
        // Predicated region
        $region37: #{tpu_custom_call.1} parent=11 // pred_check
          %p379 = pneg %p269
        $region38: #{tpu_custom_call.1} parent=11 // pred_check_branch
          %381 = sbr.rel (%p379) target = $region40
        $region39: #{tpu_custom_call.1} parent=11 // pred_region
          %s383 = ssub.s32 6144, 6144
          %384 = vsyncadd [#allocation14], %s383
          %s385 = sshll.u32 [#allocation15], 4
          %s386 = int_to_ptr.vmem [resolvable:$true] %s385
          %391 = dma.hbm_to_vmem [thread:$0]  %s9, 6144, %s386, [#allocation14], 128, 128, 8
        $region40: #{tpu_custom_call.1} parent=11 // pred_fallthru
          _
        // Predicated region
        $region41: #{tpu_custom_call.1} parent=11 // pred_check
          %p392 = pneg %p290
        $region42: #{tpu_custom_call.1} parent=11 // pred_check_branch
          %394 = sbr.rel (%p392) target = $region44
        $region43: #{tpu_custom_call.1} parent=11 // pred_region
          _
        $region44: #{tpu_custom_call.1} parent=11 // pred_fallthru
          _
      $region12: #{tpu_custom_call.1} parent=5 // pred_fallthru
        _
      %p395 = scmp.lt.s32.totalorder %s28, 4
      // Predicated region
      $region45: #{tpu_custom_call.1} parent=5 // pred_check
        %p396 = pneg %p395
      $region46: #{tpu_custom_call.1} parent=5 // pred_check_branch
        %398 = sbr.rel (%p396) target = $region48
      $region47: #{tpu_custom_call.1} parent=5 // pred_region
        // Predicated region
        $region49: #{tpu_custom_call.1} parent=47 // pred_check
          %p399 = pneg %p62
        $region50: #{tpu_custom_call.1} parent=47 // pred_check_branch
          %401 = sbr.rel (%p399) target = $region52
        $region51: #{tpu_custom_call.1} parent=47 // pred_region
          %s402 = sand.u32 %s52, 1
          %s403 = scalar_lea.sflag [#allocation5], %s402
          %s404 = sand.u32 %s52, 1
          %s405 = smul.addr %s404, 8
          %s406 = scalar_lea.vmem [#allocation4], %s405
          %s407 = smul.u32 8, %s35
          %s409 = ssub.s32 128, 128
          %410 = vsyncadd %s403, %s409
          %s411 = smul.addr %s407, 2
          %s412 = sadd.s32 %s36, %s411
          %s413 = smul.addr %s412, 16
          %s414 = scalar_lea.hbm %s0, %s413
          %s415 = sshll.u32 %s406, 4
          %s416 = int_to_ptr.vmem [resolvable:$true] %s415
          %421 = dma.hbm_to_vmem [thread:$0]  %s414, 128, %s416, %s403, 32, 16, 1
        $region52: #{tpu_custom_call.1} parent=47 // pred_fallthru
          _
        // Predicated region
        $region53: #{tpu_custom_call.1} parent=47 // pred_check
          %p422 = pneg %p90
        $region54: #{tpu_custom_call.1} parent=47 // pred_check_branch
          %424 = sbr.rel (%p422) target = $region56
        $region55: #{tpu_custom_call.1} parent=47 // pred_region
          #allocation18 [shape = 'u32[6]{0}', space=smem, size = 0x18, scoped, tag = 'DMA stride descriptor']
          %s425 = sand.u32 %s28, 1
          %s426 = scalar_lea.sflag [#allocation8], %s425
          %s427 = sand.u32 %s80, 1
          %s428 = smul.addr %s427, 512
          %s429 = scalar_lea.vmem [#allocation7], %s428
          %s430 = smul.u32 8, %s35
          %s431 = smul.u32 16, %s36
          %s433 = ssub.s32 8192, 8192
          %434 = vsyncadd %s426, %s433
          %s435 = smul.addr %s430, 32
          %s436 = sadd.s32 %s431, %s435
          %s437 = smul.addr %s436, 64
          %s438 = scalar_lea.hbm %s1, %s437
          %s440 = sshll.u32 1, 14
          %s441 = sxor.u32 4294967295, %s440
          %s443 = sld [smem:[#allocation0]]
          %s444 = sadd.s32 2, %s443
          %s446 = sshll.u32 7, 26
          %s447 = sxor.u32 4294967295, %s446
          %s448 = sand.u32 0, %s447
          %s449 = sshll.u32 %s444, 26
          %s450 = sor.u32 %s448, %s449
          %s451 = sshll.u32 %s429, 4
          %s452 = int_to_ptr.vmem [resolvable:$true] %s451
          %458 = sst [smem:[#allocation18]] 2048
          %s459 = scalar_lea.smem [#allocation18], 1
          %460 = sst [smem:[%s459]] 1024
          %s461 = scalar_lea.smem [#allocation18], 2
          %462 = sst [smem:[%s461]] 16
          %s463 = scalar_lea.smem [#allocation18], 3
          %464 = sst [smem:[%s463]] 64
          %s465 = scalar_lea.smem [#allocation18], 4
          %466 = sst [smem:[%s465]] 64
          %s467 = scalar_lea.smem [#allocation18], 5
          %468 = sst [smem:[%s467]] 4
          %470 = dma.general %s438, 8192, %s452, %s426, [#allocation17], [#allocation18], %s450, 0
        $region56: #{tpu_custom_call.1} parent=47 // pred_fallthru
          _
        // Predicated region
        $region57: #{tpu_custom_call.1} parent=47 // pred_check
          %p471 = pneg %p116
        $region58: #{tpu_custom_call.1} parent=47 // pred_check_branch
          %473 = sbr.rel (%p471) target = $region60
        $region59: #{tpu_custom_call.1} parent=47 // pred_region
          %s474 = sand.u32 %s28, 1
          %s475 = scalar_lea.sflag [#allocation8], %s474
          %s476 = sand.u32 %s106, 1
          %s477 = smul.addr %s476, 8
          %s478 = scalar_lea.vmem [#allocation9], %s477
          %s480 = ssub.s32 128, 128
          %481 = vsyncadd %s475, %s480
          %s482 = smul.addr %s35, 128
          %s483 = scalar_lea.hbm %s2, %s482
          %s485 = sshll.u32 %s478, 4
          %s486 = int_to_ptr.vmem [resolvable:$true] %s485
          %488 = dma.hbm_to_vmem [thread:$0]  %s483, 128, %s486, %s475
        $region60: #{tpu_custom_call.1} parent=47 // pred_fallthru
          _
      $region48: #{tpu_custom_call.1} parent=5 // pred_fallthru
        _
      %p489 = scmp.le.s32.totalorder 1, %s28
      %p490 = scmp.lt.s32.totalorder %s28, 5
      %p491 = pnand %p489, %p490
      %p492 = pneg %p491
      // Predicated region
      $region61: #{tpu_custom_call.1} parent=5 // pred_check
        _
      $region62: #{tpu_custom_call.1} parent=5 // pred_check_branch
        %494 = sbr.rel (%p491) target = $region64
      $region63: #{tpu_custom_call.1} parent=5 // pred_region
        %s495 = ssub.s32 %s28, 1
        %s496 = sand.u32 %s55, 1
        %s497 = scalar_lea.sflag [#allocation5], %s496
        %s498 = sand.u32 %s55, 1
        %s499 = smul.addr %s498, 8
        %s500 = scalar_lea.vmem [#allocation4], %s499
        // Predicated region
        $region65: #{tpu_custom_call.1} parent=63 // pred_check
          %p501 = pneg %p68
        $region66: #{tpu_custom_call.1} parent=63 // pred_check_branch
          %503 = sbr.rel (%p501) target = $region68
        $region67: #{tpu_custom_call.1} parent=63 // pred_region
          %504 = dma.done %s497, 128
        $region68: #{tpu_custom_call.1} parent=63 // pred_fallthru
          _
        %s505 = sand.u32 %s33, 1
        %s506 = scalar_lea.sflag [#allocation8], %s505
        %s507 = sand.u32 %s83, 1
        %s508 = smul.addr %s507, 512
        %s509 = scalar_lea.vmem [#allocation7], %s508
        // Predicated region
        $region69: #{tpu_custom_call.1} parent=63 // pred_check
          %p510 = pneg %p96
        $region70: #{tpu_custom_call.1} parent=63 // pred_check_branch
          %512 = sbr.rel (%p510) target = $region72
        $region71: #{tpu_custom_call.1} parent=63 // pred_region
          %513 = dma.done %s506, 8192
        $region72: #{tpu_custom_call.1} parent=63 // pred_fallthru
          _
        %s514 = sand.u32 %s33, 1
        %s515 = scalar_lea.sflag [#allocation8], %s514
        %s516 = sand.u32 %s109, 1
        %s517 = smul.addr %s516, 8
        %s518 = scalar_lea.vmem [#allocation9], %s517
        // Predicated region
        $region73: #{tpu_custom_call.1} parent=63 // pred_check
          %p519 = pneg %p122
        $region74: #{tpu_custom_call.1} parent=63 // pred_check_branch
          %521 = sbr.rel (%p519) target = $region76
        $region75: #{tpu_custom_call.1} parent=63 // pred_region
          %522 = dma.done %s515, 128
        $region76: #{tpu_custom_call.1} parent=63 // pred_fallthru
          _
        // Predicated region
        $region77: #{tpu_custom_call.1} parent=63 // pred_check
          %p523 = pneg %p143
        $region78: #{tpu_custom_call.1} parent=63 // pred_check_branch
          %525 = sbr.rel (%p523) target = $region80
        $region79: #{tpu_custom_call.1} parent=63 // pred_region
          %526 = dma.done [#allocation11], 2048
        $region80: #{tpu_custom_call.1} parent=63 // pred_fallthru
          _
        // Predicated region
        $region81: #{tpu_custom_call.1} parent=63 // pred_check
          %p527 = pneg %p185
        $region82: #{tpu_custom_call.1} parent=63 // pred_check_branch
          %529 = sbr.rel (%p527) target = $region84
        $region83: #{tpu_custom_call.1} parent=63 // pred_region
          %530 = dma.done [#allocation11], 2048
        $region84: #{tpu_custom_call.1} parent=63 // pred_fallthru
          _
        // Predicated region
        $region85: #{tpu_custom_call.1} parent=63 // pred_check
          %p531 = pneg %p227
        $region86: #{tpu_custom_call.1} parent=63 // pred_check_branch
          %533 = sbr.rel (%p531) target = $region88
        $region87: #{tpu_custom_call.1} parent=63 // pred_region
          %534 = dma.done [#allocation14], 2048
        $region88: #{tpu_custom_call.1} parent=63 // pred_fallthru
          _
        // Predicated region
        $region89: #{tpu_custom_call.1} parent=63 // pred_check
          %p535 = pneg %p269
        $region90: #{tpu_custom_call.1} parent=63 // pred_check_branch
          %537 = sbr.rel (%p535) target = $region92
        $region91: #{tpu_custom_call.1} parent=63 // pred_region
          %538 = dma.done [#allocation14], 6144
        $region92: #{tpu_custom_call.1} parent=63 // pred_fallthru
          _
        %s539 = sand.u32 %s55, 1
        %s540 = scalar_lea.sflag [#allocation5], %s539
        %s541 = sand.u32 %s55, 1
        %s542 = smul.addr %s541, 8
        %s543 = scalar_lea.vmem [#allocation4], %s542
        %p544 = pneg %p68
        %p545 = pneg %p65
        %s546 = sand.u32 %s33, 1
        %s547 = scalar_lea.sflag [#allocation8], %s546
        %s548 = sand.u32 %s83, 1
        %s549 = smul.addr %s548, 512
        %s550 = scalar_lea.vmem [#allocation7], %s549
        %p551 = pneg %p96
        %p552 = pneg %p93
        %s553 = sand.u32 %s33, 1
        %s554 = scalar_lea.sflag [#allocation8], %s553
        %s555 = sand.u32 %s109, 1
        %s556 = smul.addr %s555, 8
        %s557 = scalar_lea.vmem [#allocation9], %s556
        %p558 = pneg %p122
        %p559 = pneg %p119
        %p560 = pneg %p143
        %p561 = pneg %p140
        %p562 = pneg %p164
        %p563 = pneg %p161
        %p564 = pneg %p185
        %p565 = pneg %p182
        %p566 = pneg %p206
        %p567 = pneg %p203
        %p568 = pneg %p227
        %p569 = pneg %p224
        %p570 = pneg %p248
        %p571 = pneg %p245
        %p572 = pneg %p269
        %p573 = pneg %p266
        %p574 = pneg %p290
        %p575 = pneg %p287
        %p576 = pneg %p316
        %p577 = pneg %p313
        %s578 = sand.u32 %s303, 1
        %s579 = scalar_lea.sflag [#allocation6], %s578
        %s580 = sand.u32 %s303, 1
        %s581 = smul.addr %s580, 8
        %s582 = scalar_lea.vmem [#allocation16], %s581
        %s583 = smul.u32 8, %s37
        %s584 = smul.u32 8, %s37
        %s585 = smul.u32 16, %s38
        %p589 = scmp.eq.s32.totalorder %s38, 0
        // Predicated region
        $region93: #{tpu_custom_call.1} parent=63 // pred_check
          %p590 = pneg %p589
        $region94: #{tpu_custom_call.1} parent=63 // pred_check_branch
          %592 = sbr.rel (%p590) target = $region96
        $region95: #{tpu_custom_call.1} parent=63 // pred_region
          %593 = vst [vmem:[#allocation2] sm:$0x3] 0.0
          %594 = vst [vmem:[#allocation2 + $0x2] sm:$0x3] 0.0
          %595 = vst [vmem:[#allocation2 + $0x4] sm:$0x3] 0.0
          %596 = vst [vmem:[#allocation2 + $0x6] sm:$0x3] 0.0
          %597 = vst [vmem:[#allocation2 + $0x8] sm:$0x3] 0.0
          %598 = vst [vmem:[#allocation2 + $0xa] sm:$0x3] 0.0
          %599 = vst [vmem:[#allocation2 + $0xc] sm:$0x3] 0.0
          %600 = vst [vmem:[#allocation2 + $0xe] sm:$0x3] 0.0
          %vm601 = vcmask 1024
          %602 = vst.msk [vmem:[#allocation3] sm:$0x3] %vm601, 0.0
          %603 = vst.msk [vmem:[#allocation3 + $0x2] sm:$0x3] %vm601, 0.0
          %604 = vst.msk [vmem:[#allocation3 + $0x4] sm:$0x3] %vm601, 0.0
          %605 = vst.msk [vmem:[#allocation3 + $0x6] sm:$0x3] %vm601, 0.0
          %606 = vst.msk [vmem:[#allocation3 + $0x8] sm:$0x3] %vm601, 0.0
          %607 = vst.msk [vmem:[#allocation3 + $0xa] sm:$0x3] %vm601, 0.0
          %608 = vst.msk [vmem:[#allocation3 + $0xc] sm:$0x3] %vm601, 0.0
          %609 = vst.msk [vmem:[#allocation3 + $0xe] sm:$0x3] %vm601, 0.0
        $region96: #{tpu_custom_call.1} parent=63 // pred_fallthru
          _
        %v610 = vld [vmem:[%s500] sm:$0x1]
        %v611 = vld [vmem:[%s500 + $0x1] sm:$0x1]
        %v612 = vld [vmem:[%s500 + $0x2] sm:$0x1]
        %v613 = vld [vmem:[%s500 + $0x3] sm:$0x1]
        %v614 = vld [vmem:[%s500 + $0x4] sm:$0x1]
        %v615 = vld [vmem:[%s500 + $0x5] sm:$0x1]
        %v616 = vld [vmem:[%s500 + $0x6] sm:$0x1]
        %v617 = vld [vmem:[%s500 + $0x7] sm:$0x1]
        %v618 = vld [vmem:[%s509] sm:$0xf]
        %v619 = vld [vmem:[%s509 + $0x4] sm:$0xf]
        %v620 = vld [vmem:[%s509 + $0x8] sm:$0xf]
        %v621 = vld [vmem:[%s509 + $0xc] sm:$0xf]
        %v622 = vld [vmem:[%s509 + $0x10] sm:$0xf]
        %v623 = vld [vmem:[%s509 + $0x14] sm:$0xf]
        %v624 = vld [vmem:[%s509 + $0x18] sm:$0xf]
        %v625 = vld [vmem:[%s509 + $0x1c] sm:$0xf]
        %v626 = vld [vmem:[%s509 + $0x20] sm:$0xf]
        %v627 = vld [vmem:[%s509 + $0x24] sm:$0xf]
        %v628 = vld [vmem:[%s509 + $0x28] sm:$0xf]
        %v629 = vld [vmem:[%s509 + $0x2c] sm:$0xf]
        %v630 = vld [vmem:[%s509 + $0x30] sm:$0xf]
        %v631 = vld [vmem:[%s509 + $0x34] sm:$0xf]
        %v632 = vld [vmem:[%s509 + $0x38] sm:$0xf]
        %v633 = vld [vmem:[%s509 + $0x3c] sm:$0xf]
        %v634 = vld [vmem:[%s509 + $0x40] sm:$0xf]
        %v635 = vld [vmem:[%s509 + $0x44] sm:$0xf]
        %v636 = vld [vmem:[%s509 + $0x48] sm:$0xf]
        %v637 = vld [vmem:[%s509 + $0x4c] sm:$0xf]
        %v638 = vld [vmem:[%s509 + $0x50] sm:$0xf]
        %v639 = vld [vmem:[%s509 + $0x54] sm:$0xf]
        %v640 = vld [vmem:[%s509 + $0x58] sm:$0xf]
        %v641 = vld [vmem:[%s509 + $0x5c] sm:$0xf]
        %v642 = vld [vmem:[%s509 + $0x60] sm:$0xf]
        %v643 = vld [vmem:[%s509 + $0x64] sm:$0xf]
        %v644 = vld [vmem:[%s509 + $0x68] sm:$0xf]
        %v645 = vld [vmem:[%s509 + $0x6c] sm:$0xf]
        %v646 = vld [vmem:[%s509 + $0x70] sm:$0xf]
        %v647 = vld [vmem:[%s509 + $0x74] sm:$0xf]
        %v648 = vld [vmem:[%s509 + $0x78] sm:$0xf]
        %v649 = vld [vmem:[%s509 + $0x7c] sm:$0xf]
        %v650 = vld [vmem:[%s509 + $0x80] sm:$0xf]
        %v651 = vld [vmem:[%s509 + $0x84] sm:$0xf]
        %v652 = vld [vmem:[%s509 + $0x88] sm:$0xf]
        %v653 = vld [vmem:[%s509 + $0x8c] sm:$0xf]
        %v654 = vld [vmem:[%s509 + $0x90] sm:$0xf]
        %v655 = vld [vmem:[%s509 + $0x94] sm:$0xf]
        %v656 = vld [vmem:[%s509 + $0x98] sm:$0xf]
        %v657 = vld [vmem:[%s509 + $0x9c] sm:$0xf]
        %v658 = vld [vmem:[%s509 + $0xa0] sm:$0xf]
        %v659 = vld [vmem:[%s509 + $0xa4] sm:$0xf]
        %v660 = vld [vmem:[%s509 + $0xa8] sm:$0xf]
        %v661 = vld [vmem:[%s509 + $0xac] sm:$0xf]
        %v662 = vld [vmem:[%s509 + $0xb0] sm:$0xf]
        %v663 = vld [vmem:[%s509 + $0xb4] sm:$0xf]
        %v664 = vld [vmem:[%s509 + $0xb8] sm:$0xf]
        %v665 = vld [vmem:[%s509 + $0xbc] sm:$0xf]
        %v666 = vld [vmem:[%s509 + $0xc0] sm:$0xf]
        %v667 = vld [vmem:[%s509 + $0xc4] sm:$0xf]
        %v668 = vld [vmem:[%s509 + $0xc8] sm:$0xf]
        %v669 = vld [vmem:[%s509 + $0xcc] sm:$0xf]
        %v670 = vld [vmem:[%s509 + $0xd0] sm:$0xf]
        %v671 = vld [vmem:[%s509 + $0xd4] sm:$0xf]
        %v672 = vld [vmem:[%s509 + $0xd8] sm:$0xf]
        %v673 = vld [vmem:[%s509 + $0xdc] sm:$0xf]
        %v674 = vld [vmem:[%s509 + $0xe0] sm:$0xf]
        %v675 = vld [vmem:[%s509 + $0xe4] sm:$0xf]
        %v676 = vld [vmem:[%s509 + $0xe8] sm:$0xf]
        %v677 = vld [vmem:[%s509 + $0xec] sm:$0xf]
        %v678 = vld [vmem:[%s509 + $0xf0] sm:$0xf]
        %v679 = vld [vmem:[%s509 + $0xf4] sm:$0xf]
        %v680 = vld [vmem:[%s509 + $0xf8] sm:$0xf]
        %v681 = vld [vmem:[%s509 + $0xfc] sm:$0xf]
        %v682 = vld [vmem:[%s509 + $0x100] sm:$0xf]
        %v683 = vld [vmem:[%s509 + $0x104] sm:$0xf]
        %v684 = vld [vmem:[%s509 + $0x108] sm:$0xf]
        %v685 = vld [vmem:[%s509 + $0x10c] sm:$0xf]
        %v686 = vld [vmem:[%s509 + $0x110] sm:$0xf]
        %v687 = vld [vmem:[%s509 + $0x114] sm:$0xf]
        %v688 = vld [vmem:[%s509 + $0x118] sm:$0xf]
        %v689 = vld [vmem:[%s509 + $0x11c] sm:$0xf]
        %v690 = vld [vmem:[%s509 + $0x120] sm:$0xf]
        %v691 = vld [vmem:[%s509 + $0x124] sm:$0xf]
        %v692 = vld [vmem:[%s509 + $0x128] sm:$0xf]
        %v693 = vld [vmem:[%s509 + $0x12c] sm:$0xf]
        %v694 = vld [vmem:[%s509 + $0x130] sm:$0xf]
        %v695 = vld [vmem:[%s509 + $0x134] sm:$0xf]
        %v696 = vld [vmem:[%s509 + $0x138] sm:$0xf]
        %v697 = vld [vmem:[%s509 + $0x13c] sm:$0xf]
        %v698 = vld [vmem:[%s509 + $0x140] sm:$0xf]
        %v699 = vld [vmem:[%s509 + $0x144] sm:$0xf]
        %v700 = vld [vmem:[%s509 + $0x148] sm:$0xf]
        %v701 = vld [vmem:[%s509 + $0x14c] sm:$0xf]
        %v702 = vld [vmem:[%s509 + $0x150] sm:$0xf]
        %v703 = vld [vmem:[%s509 + $0x154] sm:$0xf]
        %v704 = vld [vmem:[%s509 + $0x158] sm:$0xf]
        %v705 = vld [vmem:[%s509 + $0x15c] sm:$0xf]
        %v706 = vld [vmem:[%s509 + $0x160] sm:$0xf]
        %v707 = vld [vmem:[%s509 + $0x164] sm:$0xf]
        %v708 = vld [vmem:[%s509 + $0x168] sm:$0xf]
        %v709 = vld [vmem:[%s509 + $0x16c] sm:$0xf]
        %v710 = vld [vmem:[%s509 + $0x170] sm:$0xf]
        %v711 = vld [vmem:[%s509 + $0x174] sm:$0xf]
        %v712 = vld [vmem:[%s509 + $0x178] sm:$0xf]
        %v713 = vld [vmem:[%s509 + $0x17c] sm:$0xf]
        %v714 = vld [vmem:[%s509 + $0x180] sm:$0xf]
        %v715 = vld [vmem:[%s509 + $0x184] sm:$0xf]
        %v716 = vld [vmem:[%s509 + $0x188] sm:$0xf]
        %v717 = vld [vmem:[%s509 + $0x18c] sm:$0xf]
        %v718 = vld [vmem:[%s509 + $0x190] sm:$0xf]
        %v719 = vld [vmem:[%s509 + $0x194] sm:$0xf]
        %v720 = vld [vmem:[%s509 + $0x198] sm:$0xf]
        %v721 = vld [vmem:[%s509 + $0x19c] sm:$0xf]
        %v722 = vld [vmem:[%s509 + $0x1a0] sm:$0xf]
        %v723 = vld [vmem:[%s509 + $0x1a4] sm:$0xf]
        %v724 = vld [vmem:[%s509 + $0x1a8] sm:$0xf]
        %v725 = vld [vmem:[%s509 + $0x1ac] sm:$0xf]
        %v726 = vld [vmem:[%s509 + $0x1b0] sm:$0xf]
        %v727 = vld [vmem:[%s509 + $0x1b4] sm:$0xf]
        %v728 = vld [vmem:[%s509 + $0x1b8] sm:$0xf]
        %v729 = vld [vmem:[%s509 + $0x1bc] sm:$0xf]
        %v730 = vld [vmem:[%s509 + $0x1c0] sm:$0xf]
        %v731 = vld [vmem:[%s509 + $0x1c4] sm:$0xf]
        %v732 = vld [vmem:[%s509 + $0x1c8] sm:$0xf]
        %v733 = vld [vmem:[%s509 + $0x1cc] sm:$0xf]
        %v734 = vld [vmem:[%s509 + $0x1d0] sm:$0xf]
        %v735 = vld [vmem:[%s509 + $0x1d4] sm:$0xf]
        %v736 = vld [vmem:[%s509 + $0x1d8] sm:$0xf]
        %v737 = vld [vmem:[%s509 + $0x1dc] sm:$0xf]
        %v738 = vld [vmem:[%s509 + $0x1e0] sm:$0xf]
        %v739 = vld [vmem:[%s509 + $0x1e4] sm:$0xf]
        %v740 = vld [vmem:[%s509 + $0x1e8] sm:$0xf]
        %v741 = vld [vmem:[%s509 + $0x1ec] sm:$0xf]
        %v742 = vld [vmem:[%s509 + $0x1f0] sm:$0xf]
        %v743 = vld [vmem:[%s509 + $0x1f4] sm:$0xf]
        %v744 = vld [vmem:[%s509 + $0x1f8] sm:$0xf]
        %v745 = vld [vmem:[%s509 + $0x1fc] sm:$0xf]
        %v746 = vld [vmem:[#allocation2] sm:$0x3]
        %v747 = vld [vmem:[#allocation2 + $0x2] sm:$0x3]
        %v748 = vld [vmem:[#allocation2 + $0x4] sm:$0x3]
        %v749 = vld [vmem:[#allocation2 + $0x6] sm:$0x3]
        %v750 = vld [vmem:[#allocation2 + $0x8] sm:$0x3]
        %v751 = vld [vmem:[#allocation2 + $0xa] sm:$0x3]
        %v752 = vld [vmem:[#allocation2 + $0xc] sm:$0x3]
        %v753 = vld [vmem:[#allocation2 + $0xe] sm:$0x3]
        %v770 = vunpack.c.l.b16 %v618
        %v771 = vunpack.c.l.b16 %v619
        %v772 = vunpack.c.l.b16 %v620
        %v773 = vunpack.c.l.b16 %v621
        %v774 = vunpack.c.l.b16 %v622
        %v775 = vunpack.c.l.b16 %v623
        %v776 = vunpack.c.l.b16 %v624
        %v777 = vunpack.c.l.b16 %v625
        %v778 = vunpack.c.l.b16 %v626
        %v779 = vunpack.c.l.b16 %v627
        %v780 = vunpack.c.l.b16 %v628
        %v781 = vunpack.c.l.b16 %v629
        %v782 = vunpack.c.l.b16 %v630
        %v783 = vunpack.c.l.b16 %v631
        %v784 = vunpack.c.l.b16 %v632
        %v785 = vunpack.c.l.b16 %v633
        %v786 = vpack.c.b16 %v771, %v770
        %v787 = vpack.c.b16 %v773, %v772
        %v788 = vpack.c.b16 %v775, %v774
        %v789 = vpack.c.b16 %v777, %v776
        %v790 = vpack.c.b16 %v779, %v778
        %v791 = vpack.c.b16 %v781, %v780
        %v792 = vpack.c.b16 %v783, %v782
        %v793 = vpack.c.b16 %v785, %v784
        %802 = vmatprep.subr.bf16.mxu0 0
        %803 = vmatpush1.bf16.msra.mxu0 %v786
        %804 = vmatprep.subr.bf16.mxu0 0
        %805 = vmatpush1.bf16.msra.mxu0 %v787
        %806 = vmatprep.subr.bf16.mxu0 0
        %807 = vmatpush1.bf16.msra.mxu0 %v788
        %808 = vmatprep.subr.bf16.mxu0 0
        %809 = vmatpush1.bf16.msra.mxu0 %v789
        %810 = vmatprep.subr.bf16.mxu0 0
        %811 = vmatpush1.bf16.msra.mxu0 %v790
        %812 = vmatprep.subr.bf16.mxu0 0
        %813 = vmatpush1.bf16.msra.mxu0 %v791
        %814 = vmatprep.subr.bf16.mxu0 0
        %815 = vmatpush1.bf16.msra.mxu0 %v792
        %816 = vmatprep.subr.bf16.mxu0 0
        %817 = vmatpush1.bf16.msra.mxu0 %v793
        %818 = vmatprep.subr.bf16.mxu0 0
        %819 = vmatpush1.bf16.msra.mxu0 0
        %820 = vmatprep.subr.bf16.mxu0 0
        %821 = vmatpush1.bf16.msra.mxu0 0
        %822 = vmatprep.subr.bf16.mxu0 0
        %823 = vmatpush1.bf16.msra.mxu0 0
        %824 = vmatprep.subr.bf16.mxu0 0
        %825 = vmatpush1.bf16.msra.mxu0 0
        %826 = vmatprep.subr.bf16.mxu0 0
        %827 = vmatpush1.bf16.msra.mxu0 0
        %828 = vmatprep.subr.bf16.mxu0 0
        %829 = vmatpush1.bf16.msra.mxu0 0
        %830 = vmatprep.subr.bf16.mxu0 0
        %831 = vmatpush1.bf16.msra.mxu0 0
        %832 = vmatprep.subr.bf16.mxu0 0
        %833 = vmatpush1.bf16.msra.mxu0 0
        %834 = vmatprep.mubr.bf16.mxu0 0
        %835 = vmatmul.mubr.bf16.gmra.mrb[0].mxu0 %v610
        %v836 = vpop.f32.mrb[0].mxu0
        %v837 = vadd.f32 0.0, %v836
        %v838 = vpop.f32.mrb[0].mxu0
        %v839 = vpop.f32.mrb[0].mxu0
        %v840 = vpop.f32.mrb[0].mxu0
        %841 = vdwg.mxu0
        %v858 = vunpack.c.l.b16 %v634
        %v859 = vunpack.c.l.b16 %v635
        %v860 = vunpack.c.l.b16 %v636
        %v861 = vunpack.c.l.b16 %v637
        %v862 = vunpack.c.l.b16 %v638
        %v863 = vunpack.c.l.b16 %v639
        %v864 = vunpack.c.l.b16 %v640
        %v865 = vunpack.c.l.b16 %v641
        %v866 = vunpack.c.l.b16 %v642
        %v867 = vunpack.c.l.b16 %v643
        %v868 = vunpack.c.l.b16 %v644
        %v869 = vunpack.c.l.b16 %v645
        %v870 = vunpack.c.l.b16 %v646
        %v871 = vunpack.c.l.b16 %v647
        %v872 = vunpack.c.l.b16 %v648
        %v873 = vunpack.c.l.b16 %v649
        %v874 = vpack.c.b16 %v859, %v858
        %v875 = vpack.c.b16 %v861, %v860
        %v876 = vpack.c.b16 %v863, %v862
        %v877 = vpack.c.b16 %v865, %v864
        %v878 = vpack.c.b16 %v867, %v866
        %v879 = vpack.c.b16 %v869, %v868
        %v880 = vpack.c.b16 %v871, %v870
        %v881 = vpack.c.b16 %v873, %v872
        %890 = vmatprep.subr.bf16.mxu0 0
        %891 = vmatpush1.bf16.msra.mxu0 %v874
        %892 = vmatprep.subr.bf16.mxu0 0
        %893 = vmatpush1.bf16.msra.mxu0 %v875
        %894 = vmatprep.subr.bf16.mxu0 0
        %895 = vmatpush1.bf16.msra.mxu0 %v876
        %896 = vmatprep.subr.bf16.mxu0 0
        %897 = vmatpush1.bf16.msra.mxu0 %v877
        %898 = vmatprep.subr.bf16.mxu0 0
        %899 = vmatpush1.bf16.msra.mxu0 %v878
        %900 = vmatprep.subr.bf16.mxu0 0
        %901 = vmatpush1.bf16.msra.mxu0 %v879
        %902 = vmatprep.subr.bf16.mxu0 0
        %903 = vmatpush1.bf16.msra.mxu0 %v880
        %904 = vmatprep.subr.bf16.mxu0 0
        %905 = vmatpush1.bf16.msra.mxu0 %v881
        %906 = vmatprep.subr.bf16.mxu0 0
        %907 = vmatpush1.bf16.msra.mxu0 0
        %908 = vmatprep.subr.bf16.mxu0 0
        %909 = vmatpush1.bf16.msra.mxu0 0
        %910 = vmatprep.subr.bf16.mxu0 0
        %911 = vmatpush1.bf16.msra.mxu0 0
        %912 = vmatprep.subr.bf16.mxu0 0
        %913 = vmatpush1.bf16.msra.mxu0 0
        %914 = vmatprep.subr.bf16.mxu0 0
        %915 = vmatpush1.bf16.msra.mxu0 0
        %916 = vmatprep.subr.bf16.mxu0 0
        %917 = vmatpush1.bf16.msra.mxu0 0
        %918 = vmatprep.subr.bf16.mxu0 0
        %919 = vmatpush1.bf16.msra.mxu0 0
        %920 = vmatprep.subr.bf16.mxu0 0
        %921 = vmatpush1.bf16.msra.mxu0 0
        %922 = vmatprep.mubr.bf16.mxu0 0
        %923 = vmatmul.mubr.bf16.gmra.mrb[0].mxu0 %v611
        %v924 = vpop.f32.mrb[0].mxu0
        %v925 = vadd.f32 0.0, %v924
        %v926 = vpop.f32.mrb[0].mxu0
        %v927 = vpop.f32.mrb[0].mxu0
        %v928 = vpop.f32.mrb[0].mxu0
        %929 = vdwg.mxu0
        %v946 = vunpack.c.l.b16 %v650
        %v947 = vunpack.c.l.b16 %v651
        %v948 = vunpack.c.l.b16 %v652
        %v949 = vunpack.c.l.b16 %v653
        %v950 = vunpack.c.l.b16 %v654
        %v951 = vunpack.c.l.b16 %v655
        %v952 = vunpack.c.l.b16 %v656
        %v953 = vunpack.c.l.b16 %v657
        %v954 = vunpack.c.l.b16 %v658
        %v955 = vunpack.c.l.b16 %v659
        %v956 = vunpack.c.l.b16 %v660
        %v957 = vunpack.c.l.b16 %v661
        %v958 = vunpack.c.l.b16 %v662
        %v959 = vunpack.c.l.b16 %v663
        %v960 = vunpack.c.l.b16 %v664
        %v961 = vunpack.c.l.b16 %v665
        %v962 = vpack.c.b16 %v947, %v946
        %v963 = vpack.c.b16 %v949, %v948
        %v964 = vpack.c.b16 %v951, %v950
        %v965 = vpack.c.b16 %v953, %v952
        %v966 = vpack.c.b16 %v955, %v954
        %v967 = vpack.c.b16 %v957, %v956
        %v968 = vpack.c.b16 %v959, %v958
        %v969 = vpack.c.b16 %v961, %v960
        %978 = vmatprep.subr.bf16.mxu0 0
        %979 = vmatpush1.bf16.msra.mxu0 %v962
        %980 = vmatprep.subr.bf16.mxu0 0
        %981 = vmatpush1.bf16.msra.mxu0 %v963
        %982 = vmatprep.subr.bf16.mxu0 0
        %983 = vmatpush1.bf16.msra.mxu0 %v964
        %984 = vmatprep.subr.bf16.mxu0 0
        %985 = vmatpush1.bf16.msra.mxu0 %v965
        %986 = vmatprep.subr.bf16.mxu0 0
        %987 = vmatpush1.bf16.msra.mxu0 %v966
        %988 = vmatprep.subr.bf16.mxu0 0
        %989 = vmatpush1.bf16.msra.mxu0 %v967
        %990 = vmatprep.subr.bf16.mxu0 0
        %991 = vmatpush1.bf16.msra.mxu0 %v968
        %992 = vmatprep.subr.bf16.mxu0 0
        %993 = vmatpush1.bf16.msra.mxu0 %v969
        %994 = vmatprep.subr.bf16.mxu0 0
        %995 = vmatpush1.bf16.msra.mxu0 0
        %996 = vmatprep.subr.bf16.mxu0 0
        %997 = vmatpush1.bf16.msra.mxu0 0
        %998 = vmatprep.subr.bf16.mxu0 0
        %999 = vmatpush1.bf16.msra.mxu0 0
        %1000 = vmatprep.subr.bf16.mxu0 0
        %1001 = vmatpush1.bf16.msra.mxu0 0
        %1002 = vmatprep.subr.bf16.mxu0 0
        %1003 = vmatpush1.bf16.msra.mxu0 0
        %1004 = vmatprep.subr.bf16.mxu0 0
        %1005 = vmatpush1.bf16.msra.mxu0 0
        %1006 = vmatprep.subr.bf16.mxu0 0
        %1007 = vmatpush1.bf16.msra.mxu0 0
        %1008 = vmatprep.subr.bf16.mxu0 0
        %1009 = vmatpush1.bf16.msra.mxu0 0
        %1010 = vmatprep.mubr.bf16.mxu0 0
        %1011 = vmatmul.mubr.bf16.gmra.mrb[0].mxu0 %v612
        %v1012 = vpop.f32.mrb[0].mxu0
        %v1013 = vadd.f32 0.0, %v1012
        %v1014 = vpop.f32.mrb[0].mxu0
        %v1015 = vpop.f32.mrb[0].mxu0
        %v1016 = vpop.f32.mrb[0].mxu0
        %1017 = vdwg.mxu0
        %v1034 = vunpack.c.l.b16 %v666
        %v1035 = vunpack.c.l.b16 %v667
        %v1036 = vunpack.c.l.b16 %v668
        %v1037 = vunpack.c.l.b16 %v669
        %v1038 = vunpack.c.l.b16 %v670
        %v1039 = vunpack.c.l.b16 %v671
        %v1040 = vunpack.c.l.b16 %v672
        %v1041 = vunpack.c.l.b16 %v673
        %v1042 = vunpack.c.l.b16 %v674
        %v1043 = vunpack.c.l.b16 %v675
        %v1044 = vunpack.c.l.b16 %v676
        %v1045 = vunpack.c.l.b16 %v677
        %v1046 = vunpack.c.l.b16 %v678
        %v1047 = vunpack.c.l.b16 %v679
        %v1048 = vunpack.c.l.b16 %v680
        %v1049 = vunpack.c.l.b16 %v681
        %v1050 = vpack.c.b16 %v1035, %v1034
        %v1051 = vpack.c.b16 %v1037, %v1036
        %v1052 = vpack.c.b16 %v1039, %v1038
        %v1053 = vpack.c.b16 %v1041, %v1040
        %v1054 = vpack.c.b16 %v1043, %v1042
        %v1055 = vpack.c.b16 %v1045, %v1044
        %v1056 = vpack.c.b16 %v1047, %v1046
        %v1057 = vpack.c.b16 %v1049, %v1048
        %1066 = vmatprep.subr.bf16.mxu0 0
        %1067 = vmatpush1.bf16.msra.mxu0 %v1050
        %1068 = vmatprep.subr.bf16.mxu0 0
        %1069 = vmatpush1.bf16.msra.mxu0 %v1051
        %1070 = vmatprep.subr.bf16.mxu0 0
        %1071 = vmatpush1.bf16.msra.mxu0 %v1052
        %1072 = vmatprep.subr.bf16.mxu0 0
        %1073 = vmatpush1.bf16.msra.mxu0 %v1053
        %1074 = vmatprep.subr.bf16.mxu0 0
        %1075 = vmatpush1.bf16.msra.mxu0 %v1054
        %1076 = vmatprep.subr.bf16.mxu0 0
        %1077 = vmatpush1.bf16.msra.mxu0 %v1055
        %1078 = vmatprep.subr.bf16.mxu0 0
        %1079 = vmatpush1.bf16.msra.mxu0 %v1056
        %1080 = vmatprep.subr.bf16.mxu0 0
        %1081 = vmatpush1.bf16.msra.mxu0 %v1057
        %1082 = vmatprep.subr.bf16.mxu0 0
        %1083 = vmatpush1.bf16.msra.mxu0 0
        %1084 = vmatprep.subr.bf16.mxu0 0
        %1085 = vmatpush1.bf16.msra.mxu0 0
        %1086 = vmatprep.subr.bf16.mxu0 0
        %1087 = vmatpush1.bf16.msra.mxu0 0
        %1088 = vmatprep.subr.bf16.mxu0 0
        %1089 = vmatpush1.bf16.msra.mxu0 0
        %1090 = vmatprep.subr.bf16.mxu0 0
        %1091 = vmatpush1.bf16.msra.mxu0 0
        %1092 = vmatprep.subr.bf16.mxu0 0
        %1093 = vmatpush1.bf16.msra.mxu0 0
        %1094 = vmatprep.subr.bf16.mxu0 0
        %1095 = vmatpush1.bf16.msra.mxu0 0
        %1096 = vmatprep.subr.bf16.mxu0 0
        %1097 = vmatpush1.bf16.msra.mxu0 0
        %1098 = vmatprep.mubr.bf16.mxu0 0
        %1099 = vmatmul.mubr.bf16.gmra.mrb[0].mxu0 %v613
        %v1100 = vpop.f32.mrb[0].mxu0
        %v1101 = vadd.f32 0.0, %v1100
        %v1102 = vpop.f32.mrb[0].mxu0
        %v1103 = vpop.f32.mrb[0].mxu0
        %v1104 = vpop.f32.mrb[0].mxu0
        %1105 = vdwg.mxu0
        %v1122 = vunpack.c.l.b16 %v682
        %v1123 = vunpack.c.l.b16 %v683
        %v1124 = vunpack.c.l.b16 %v684
        %v1125 = vunpack.c.l.b16 %v685
        %v1126 = vunpack.c.l.b16 %v686
        %v1127 = vunpack.c.l.b16 %v687
        %v1128 = vunpack.c.l.b16 %v688
        %v1129 = vunpack.c.l.b16 %v689
        %v1130 = vunpack.c.l.b16 %v690
        %v1131 = vunpack.c.l.b16 %v691
        %v1132 = vunpack.c.l.b16 %v692
        %v1133 = vunpack.c.l.b16 %v693
        %v1134 = vunpack.c.l.b16 %v694
        %v1135 = vunpack.c.l.b16 %v695
        %v1136 = vunpack.c.l.b16 %v696
        %v1137 = vunpack.c.l.b16 %v697
        %v1138 = vpack.c.b16 %v1123, %v1122
        %v1139 = vpack.c.b16 %v1125, %v1124
        %v1140 = vpack.c.b16 %v1127, %v1126
        %v1141 = vpack.c.b16 %v1129, %v1128
        %v1142 = vpack.c.b16 %v1131, %v1130
        %v1143 = vpack.c.b16 %v1133, %v1132
        %v1144 = vpack.c.b16 %v1135, %v1134
        %v1145 = vpack.c.b16 %v1137, %v1136
        %1154 = vmatprep.subr.bf16.mxu0 0
        %1155 = vmatpush1.bf16.msra.mxu0 %v1138
        %1156 = vmatprep.subr.bf16.mxu0 0
        %1157 = vmatpush1.bf16.msra.mxu0 %v1139
        %1158 = vmatprep.subr.bf16.mxu0 0
        %1159 = vmatpush1.bf16.msra.mxu0 %v1140
        %1160 = vmatprep.subr.bf16.mxu0 0
        %1161 = vmatpush1.bf16.msra.mxu0 %v1141
        %1162 = vmatprep.subr.bf16.mxu0 0
        %1163 = vmatpush1.bf16.msra.mxu0 %v1142
        %1164 = vmatprep.subr.bf16.mxu0 0
        %1165 = vmatpush1.bf16.msra.mxu0 %v1143
        %1166 = vmatprep.subr.bf16.mxu0 0
        %1167 = vmatpush1.bf16.msra.mxu0 %v1144
        %1168 = vmatprep.subr.bf16.mxu0 0
        %1169 = vmatpush1.bf16.msra.mxu0 %v1145
        %1170 = vmatprep.subr.bf16.mxu0 0
        %1171 = vmatpush1.bf16.msra.mxu0 0
        %1172 = vmatprep.subr.bf16.mxu0 0
        %1173 = vmatpush1.bf16.msra.mxu0 0
        %1174 = vmatprep.subr.bf16.mxu0 0
        %1175 = vmatpush1.bf16.msra.mxu0 0
        %1176 = vmatprep.subr.bf16.mxu0 0
        %1177 = vmatpush1.bf16.msra.mxu0 0
        %1178 = vmatprep.subr.bf16.mxu0 0
        %1179 = vmatpush1.bf16.msra.mxu0 0
        %1180 = vmatprep.subr.bf16.mxu0 0
        %1181 = vmatpush1.bf16.msra.mxu0 0
        %1182 = vmatprep.subr.bf16.mxu0 0
        %1183 = vmatpush1.bf16.msra.mxu0 0
        %1184 = vmatprep.subr.bf16.mxu0 0
        %1185 = vmatpush1.bf16.msra.mxu0 0
        %1186 = vmatprep.mubr.bf16.mxu0 0
        %1187 = vmatmul.mubr.bf16.gmra.mrb[0].mxu0 %v614
        %v1188 = vpop.f32.mrb[0].mxu0
        %v1189 = vadd.f32 0.0, %v1188
        %v1190 = vpop.f32.mrb[0].mxu0
        %v1191 = vpop.f32.mrb[0].mxu0
        %v1192 = vpop.f32.mrb[0].mxu0
        %1193 = vdwg.mxu0
        %v1210 = vunpack.c.l.b16 %v698
        %v1211 = vunpack.c.l.b16 %v699
        %v1212 = vunpack.c.l.b16 %v700
        %v1213 = vunpack.c.l.b16 %v701
        %v1214 = vunpack.c.l.b16 %v702
        %v1215 = vunpack.c.l.b16 %v703
        %v1216 = vunpack.c.l.b16 %v704
        %v1217 = vunpack.c.l.b16 %v705
        %v1218 = vunpack.c.l.b16 %v706
        %v1219 = vunpack.c.l.b16 %v707
        %v1220 = vunpack.c.l.b16 %v708
        %v1221 = vunpack.c.l.b16 %v709
        %v1222 = vunpack.c.l.b16 %v710
        %v1223 = vunpack.c.l.b16 %v711
        %v1224 = vunpack.c.l.b16 %v712
        %v1225 = vunpack.c.l.b16 %v713
        %v1226 = vpack.c.b16 %v1211, %v1210
        %v1227 = vpack.c.b16 %v1213, %v1212
        %v1228 = vpack.c.b16 %v1215, %v1214
        %v1229 = vpack.c.b16 %v1217, %v1216
        %v1230 = vpack.c.b16 %v1219, %v1218
        %v1231 = vpack.c.b16 %v1221, %v1220
        %v1232 = vpack.c.b16 %v1223, %v1222
        %v1233 = vpack.c.b16 %v1225, %v1224
        %1242 = vmatprep.subr.bf16.mxu0 0
        %1243 = vmatpush1.bf16.msra.mxu0 %v1226
        %1244 = vmatprep.subr.bf16.mxu0 0
        %1245 = vmatpush1.bf16.msra.mxu0 %v1227
        %1246 = vmatprep.subr.bf16.mxu0 0
        %1247 = vmatpush1.bf16.msra.mxu0 %v1228
        %1248 = vmatprep.subr.bf16.mxu0 0
        %1249 = vmatpush1.bf16.msra.mxu0 %v1229
        %1250 = vmatprep.subr.bf16.mxu0 0
        %1251 = vmatpush1.bf16.msra.mxu0 %v1230
        %1252 = vmatprep.subr.bf16.mxu0 0
        %1253 = vmatpush1.bf16.msra.mxu0 %v1231
        %1254 = vmatprep.subr.bf16.mxu0 0
        %1255 = vmatpush1.bf16.msra.mxu0 %v1232
        %1256 = vmatprep.subr.bf16.mxu0 0
        %1257 = vmatpush1.bf16.msra.mxu0 %v1233
        %1258 = vmatprep.subr.bf16.mxu0 0
        %1259 = vmatpush1.bf16.msra.mxu0 0
        %1260 = vmatprep.subr.bf16.mxu0 0
        %1261 = vmatpush1.bf16.msra.mxu0 0
        %1262 = vmatprep.subr.bf16.mxu0 0
        %1263 = vmatpush1.bf16.msra.mxu0 0
        %1264 = vmatprep.subr.bf16.mxu0 0
        %1265 = vmatpush1.bf16.msra.mxu0 0
        %1266 = vmatprep.subr.bf16.mxu0 0
        %1267 = vmatpush1.bf16.msra.mxu0 0
        %1268 = vmatprep.subr.bf16.mxu0 0
        %1269 = vmatpush1.bf16.msra.mxu0 0
        %1270 = vmatprep.subr.bf16.mxu0 0
        %1271 = vmatpush1.bf16.msra.mxu0 0
        %1272 = vmatprep.subr.bf16.mxu0 0
        %1273 = vmatpush1.bf16.msra.mxu0 0
        %1274 = vmatprep.mubr.bf16.mxu0 0
        %1275 = vmatmul.mubr.bf16.gmra.mrb[0].mxu0 %v615
        %v1276 = vpop.f32.mrb[0].mxu0
        %v1277 = vadd.f32 0.0, %v1276
        %v1278 = vpop.f32.mrb[0].mxu0
        %v1279 = vpop.f32.mrb[0].mxu0
        %v1280 = vpop.f32.mrb[0].mxu0
        %1281 = vdwg.mxu0
        %v1298 = vunpack.c.l.b16 %v714
        %v1299 = vunpack.c.l.b16 %v715
        %v1300 = vunpack.c.l.b16 %v716
        %v1301 = vunpack.c.l.b16 %v717
        %v1302 = vunpack.c.l.b16 %v718
        %v1303 = vunpack.c.l.b16 %v719
        %v1304 = vunpack.c.l.b16 %v720
        %v1305 = vunpack.c.l.b16 %v721
        %v1306 = vunpack.c.l.b16 %v722
        %v1307 = vunpack.c.l.b16 %v723
        %v1308 = vunpack.c.l.b16 %v724
        %v1309 = vunpack.c.l.b16 %v725
        %v1310 = vunpack.c.l.b16 %v726
        %v1311 = vunpack.c.l.b16 %v727
        %v1312 = vunpack.c.l.b16 %v728
        %v1313 = vunpack.c.l.b16 %v729
        %v1314 = vpack.c.b16 %v1299, %v1298
        %v1315 = vpack.c.b16 %v1301, %v1300
        %v1316 = vpack.c.b16 %v1303, %v1302
        %v1317 = vpack.c.b16 %v1305, %v1304
        %v1318 = vpack.c.b16 %v1307, %v1306
        %v1319 = vpack.c.b16 %v1309, %v1308
        %v1320 = vpack.c.b16 %v1311, %v1310
        %v1321 = vpack.c.b16 %v1313, %v1312
        %1330 = vmatprep.subr.bf16.mxu0 0
        %1331 = vmatpush1.bf16.msra.mxu0 %v1314
        %1332 = vmatprep.subr.bf16.mxu0 0
        %1333 = vmatpush1.bf16.msra.mxu0 %v1315
        %1334 = vmatprep.subr.bf16.mxu0 0
        %1335 = vmatpush1.bf16.msra.mxu0 %v1316
        %1336 = vmatprep.subr.bf16.mxu0 0
        %1337 = vmatpush1.bf16.msra.mxu0 %v1317
        %1338 = vmatprep.subr.bf16.mxu0 0
        %1339 = vmatpush1.bf16.msra.mxu0 %v1318
        %1340 = vmatprep.subr.bf16.mxu0 0
        %1341 = vmatpush1.bf16.msra.mxu0 %v1319
        %1342 = vmatprep.subr.bf16.mxu0 0
        %1343 = vmatpush1.bf16.msra.mxu0 %v1320
        %1344 = vmatprep.subr.bf16.mxu0 0
        %1345 = vmatpush1.bf16.msra.mxu0 %v1321
        %1346 = vmatprep.subr.bf16.mxu0 0
        %1347 = vmatpush1.bf16.msra.mxu0 0
        %1348 = vmatprep.subr.bf16.mxu0 0
        %1349 = vmatpush1.bf16.msra.mxu0 0
        %1350 = vmatprep.subr.bf16.mxu0 0
        %1351 = vmatpush1.bf16.msra.mxu0 0
        %1352 = vmatprep.subr.bf16.mxu0 0
        %1353 = vmatpush1.bf16.msra.mxu0 0
        %1354 = vmatprep.subr.bf16.mxu0 0
        %1355 = vmatpush1.bf16.msra.mxu0 0
        %1356 = vmatprep.subr.bf16.mxu0 0
        %1357 = vmatpush1.bf16.msra.mxu0 0
        %1358 = vmatprep.subr.bf16.mxu0 0
        %1359 = vmatpush1.bf16.msra.mxu0 0
        %1360 = vmatprep.subr.bf16.mxu0 0
        %1361 = vmatpush1.bf16.msra.mxu0 0
        %1362 = vmatprep.mubr.bf16.mxu0 0
        %1363 = vmatmul.mubr.bf16.gmra.mrb[0].mxu0 %v616
        %v1364 = vpop.f32.mrb[0].mxu0
        %v1365 = vadd.f32 0.0, %v1364
        %v1366 = vpop.f32.mrb[0].mxu0
        %v1367 = vpop.f32.mrb[0].mxu0
        %v1368 = vpop.f32.mrb[0].mxu0
        %1369 = vdwg.mxu0
        %v1386 = vunpack.c.l.b16 %v730
        %v1387 = vunpack.c.l.b16 %v731
        %v1388 = vunpack.c.l.b16 %v732
        %v1389 = vunpack.c.l.b16 %v733
        %v1390 = vunpack.c.l.b16 %v734
        %v1391 = vunpack.c.l.b16 %v735
        %v1392 = vunpack.c.l.b16 %v736
        %v1393 = vunpack.c.l.b16 %v737
        %v1394 = vunpack.c.l.b16 %v738
        %v1395 = vunpack.c.l.b16 %v739
        %v1396 = vunpack.c.l.b16 %v740
        %v1397 = vunpack.c.l.b16 %v741
        %v1398 = vunpack.c.l.b16 %v742
        %v1399 = vunpack.c.l.b16 %v743
        %v1400 = vunpack.c.l.b16 %v744
        %v1401 = vunpack.c.l.b16 %v745
        %v1402 = vpack.c.b16 %v1387, %v1386
        %v1403 = vpack.c.b16 %v1389, %v1388
        %v1404 = vpack.c.b16 %v1391, %v1390
        %v1405 = vpack.c.b16 %v1393, %v1392
        %v1406 = vpack.c.b16 %v1395, %v1394
        %v1407 = vpack.c.b16 %v1397, %v1396
        %v1408 = vpack.c.b16 %v1399, %v1398
        %v1409 = vpack.c.b16 %v1401, %v1400
        %1418 = vmatprep.subr.bf16.mxu0 0
        %1419 = vmatpush1.bf16.msra.mxu0 %v1402
        %1420 = vmatprep.subr.bf16.mxu0 0
        %1421 = vmatpush1.bf16.msra.mxu0 %v1403
        %1422 = vmatprep.subr.bf16.mxu0 0
        %1423 = vmatpush1.bf16.msra.mxu0 %v1404
        %1424 = vmatprep.subr.bf16.mxu0 0
        %1425 = vmatpush1.bf16.msra.mxu0 %v1405
        %1426 = vmatprep.subr.bf16.mxu0 0
        %1427 = vmatpush1.bf16.msra.mxu0 %v1406
        %1428 = vmatprep.subr.bf16.mxu0 0
        %1429 = vmatpush1.bf16.msra.mxu0 %v1407
        %1430 = vmatprep.subr.bf16.mxu0 0
        %1431 = vmatpush1.bf16.msra.mxu0 %v1408
        %1432 = vmatprep.subr.bf16.mxu0 0
        %1433 = vmatpush1.bf16.msra.mxu0 %v1409
        %1434 = vmatprep.subr.bf16.mxu0 0
        %1435 = vmatpush1.bf16.msra.mxu0 0
        %1436 = vmatprep.subr.bf16.mxu0 0
        %1437 = vmatpush1.bf16.msra.mxu0 0
        %1438 = vmatprep.subr.bf16.mxu0 0
        %1439 = vmatpush1.bf16.msra.mxu0 0
        %1440 = vmatprep.subr.bf16.mxu0 0
        %1441 = vmatpush1.bf16.msra.mxu0 0
        %1442 = vmatprep.subr.bf16.mxu0 0
        %1443 = vmatpush1.bf16.msra.mxu0 0
        %1444 = vmatprep.subr.bf16.mxu0 0
        %1445 = vmatpush1.bf16.msra.mxu0 0
        %1446 = vmatprep.subr.bf16.mxu0 0
        %1447 = vmatpush1.bf16.msra.mxu0 0
        %1448 = vmatprep.subr.bf16.mxu0 0
        %1449 = vmatpush1.bf16.msra.mxu0 0
        %1450 = vmatprep.mubr.bf16.mxu0 0
        %1451 = vmatmul.mubr.bf16.gmra.mrb[0].mxu0 %v617
        %v1452 = vpop.f32.mrb[0].mxu0
        %v1453 = vadd.f32 0.0, %v1452
        %v1454 = vpop.f32.mrb[0].mxu0
        %v1455 = vpop.f32.mrb[0].mxu0
        %v1456 = vpop.f32.mrb[0].mxu0
        %1457 = vdwg.mxu0
        %v1458 = vadd.f32 %v746, %v837
        %v1459 = vadd.f32 %v747, %v925
        %v1460 = vadd.f32 %v748, %v1013
        %v1461 = vadd.f32 %v749, %v1101
        %v1462 = vadd.f32 %v750, %v1189
        %v1463 = vadd.f32 %v751, %v1277
        %v1464 = vadd.f32 %v752, %v1365
        %v1465 = vadd.f32 %v753, %v1453
        %1466 = vst [vmem:[#allocation2] sm:$0x3] %v1458
        %1467 = vst [vmem:[#allocation2 + $0x2] sm:$0x3] %v1459
        %1468 = vst [vmem:[#allocation2 + $0x4] sm:$0x3] %v1460
        %1469 = vst [vmem:[#allocation2 + $0x6] sm:$0x3] %v1461
        %1470 = vst [vmem:[#allocation2 + $0x8] sm:$0x3] %v1462
        %1471 = vst [vmem:[#allocation2 + $0xa] sm:$0x3] %v1463
        %1472 = vst [vmem:[#allocation2 + $0xc] sm:$0x3] %v1464
        %1473 = vst [vmem:[#allocation2 + $0xe] sm:$0x3] %v1465
        %v1474 = vld [vmem:[#allocation3] sm:$0x3]
        %v1475 = vld [vmem:[#allocation3 + $0x2] sm:$0x3]
        %v1476 = vld [vmem:[#allocation3 + $0x4] sm:$0x3]
        %v1477 = vld [vmem:[#allocation3 + $0x6] sm:$0x3]
        %v1478 = vld [vmem:[#allocation3 + $0x8] sm:$0x3]
        %v1479 = vld [vmem:[#allocation3 + $0xa] sm:$0x3]
        %v1480 = vld [vmem:[#allocation3 + $0xc] sm:$0x3]
        %v1481 = vld [vmem:[#allocation3 + $0xe] sm:$0x3]
        %vm1482 = vcmp.ne.bf16.partialorder %v610, 0
        %vm1483 = vcmp.ne.bf16.partialorder %v611, 0
        %vm1484 = vcmp.ne.bf16.partialorder %v612, 0
        %vm1485 = vcmp.ne.bf16.partialorder %v613, 0
        %vm1486 = vcmp.ne.bf16.partialorder %v614, 0
        %vm1487 = vcmp.ne.bf16.partialorder %v615, 0
        %vm1488 = vcmp.ne.bf16.partialorder %v616, 0
        %vm1489 = vcmp.ne.bf16.partialorder %v617, 0
        %v1490 = vsel %vm1482, 65537, 0
        %v1491 = vsel %vm1483, 65537, 0
        %v1492 = vsel %vm1484, 65537, 0
        %v1493 = vsel %vm1485, 65537, 0
        %v1494 = vsel %vm1486, 65537, 0
        %v1495 = vsel %vm1487, 65537, 0
        %v1496 = vsel %vm1488, 65537, 0
        %v1497 = vsel %vm1489, 65537, 0
        %v1498 = vunpack.c.l.b16 %v1490
        %v1499 = vunpack.c.l.b16 %v1491
        %v1500 = vunpack.c.l.b16 %v1492
        %v1501 = vunpack.c.l.b16 %v1493
        %v1502 = vunpack.c.l.b16 %v1494
        %v1503 = vunpack.c.l.b16 %v1495
        %v1504 = vunpack.c.l.b16 %v1496
        %v1505 = vunpack.c.l.b16 %v1497
        %vm1506 = vcmp.ne.s32.totalorder %v1498, 0
        %vm1507 = vcmp.ne.s32.totalorder %v1499, 0
        %vm1508 = vcmp.ne.s32.totalorder %v1500, 0
        %vm1509 = vcmp.ne.s32.totalorder %v1501, 0
        %vm1510 = vcmp.ne.s32.totalorder %v1502, 0
        %vm1511 = vcmp.ne.s32.totalorder %v1503, 0
        %vm1512 = vcmp.ne.s32.totalorder %v1504, 0
        %vm1513 = vcmp.ne.s32.totalorder %v1505, 0
        %v1514 = vsel %vm1506, 1, 0
        %v1515 = vsel %vm1507, 1, 0
        %v1516 = vsel %vm1508, 1, 0
        %v1517 = vsel %vm1509, 1, 0
        %v1518 = vsel %vm1510, 1, 0
        %v1519 = vsel %vm1511, 1, 0
        %v1520 = vsel %vm1512, 1, 0
        %v1521 = vsel %vm1513, 1, 0
        %v1522 = vcvt.s32.f32 %v1514
        %v1523 = vcvt.s32.f32 %v1515
        %v1524 = vcvt.s32.f32 %v1516
        %v1525 = vcvt.s32.f32 %v1517
        %v1526 = vcvt.s32.f32 %v1518
        %v1527 = vcvt.s32.f32 %v1519
        %v1528 = vcvt.s32.f32 %v1520
        %v1529 = vcvt.s32.f32 %v1521
        %vm1530 = vcmask 1041408
        %v1531 = vsel %vm1530, %v1522, 0.0
        %1532 = vadd.xlane.f32.xlu0 %v1531
        %v1533 = vpop.xlane.xlu0 %1532
        %v1534 = vsel %vm1530, %v1523, 0.0
        %1535 = vadd.xlane.f32.xlu0 %v1534
        %v1536 = vpop.xlane.xlu0 %1535
        %v1537 = vsel %vm1530, %v1524, 0.0
        %1538 = vadd.xlane.f32.xlu0 %v1537
        %v1539 = vpop.xlane.xlu0 %1538
        %v1540 = vsel %vm1530, %v1525, 0.0
        %1541 = vadd.xlane.f32.xlu0 %v1540
        %v1542 = vpop.xlane.xlu0 %1541
        %v1543 = vsel %vm1530, %v1526, 0.0
        %1544 = vadd.xlane.f32.xlu0 %v1543
        %v1545 = vpop.xlane.xlu0 %1544
        %v1546 = vsel %vm1530, %v1527, 0.0
        %1547 = vadd.xlane.f32.xlu0 %v1546
        %v1548 = vpop.xlane.xlu0 %1547
        %v1549 = vsel %vm1530, %v1528, 0.0
        %1550 = vadd.xlane.f32.xlu0 %v1549
        %v1551 = vpop.xlane.xlu0 %1550
        %v1552 = vsel %vm1530, %v1529, 0.0
        %1553 = vadd.xlane.f32.xlu0 %v1552
        %v1554 = vpop.xlane.xlu0 %1553
        %v1555 = vadd.f32 %v1474, %v1533
        %v1556 = vadd.f32 %v1475, %v1536
        %v1557 = vadd.f32 %v1476, %v1539
        %v1558 = vadd.f32 %v1477, %v1542
        %v1559 = vadd.f32 %v1478, %v1545
        %v1560 = vadd.f32 %v1479, %v1548
        %v1561 = vadd.f32 %v1480, %v1551
        %v1562 = vadd.f32 %v1481, %v1554
        %vm1563 = vcmask 1024
        %1564 = vst.msk [vmem:[#allocation3] sm:$0x3] %vm1563, %v1555
        %1565 = vst.msk [vmem:[#allocation3 + $0x2] sm:$0x3] %vm1563, %v1556
        %1566 = vst.msk [vmem:[#allocation3 + $0x4] sm:$0x3] %vm1563, %v1557
        %1567 = vst.msk [vmem:[#allocation3 + $0x6] sm:$0x3] %vm1563, %v1558
        %1568 = vst.msk [vmem:[#allocation3 + $0x8] sm:$0x3] %vm1563, %v1559
        %1569 = vst.msk [vmem:[#allocation3 + $0xa] sm:$0x3] %vm1563, %v1560
        %1570 = vst.msk [vmem:[#allocation3 + $0xc] sm:$0x3] %vm1563, %v1561
        %1571 = vst.msk [vmem:[#allocation3 + $0xe] sm:$0x3] %vm1563, %v1562
        %p1572 = scmp.eq.s32.totalorder %s38, 1
        // Predicated region
        $region97: #{tpu_custom_call.1} parent=63 // pred_check
          %p1573 = pneg %p1572
        $region98: #{tpu_custom_call.1} parent=63 // pred_check_branch
          %1575 = sbr.rel (%p1573) target = $region100
        $region99: #{tpu_custom_call.1} parent=63 // pred_region
          %v1576 = vld [vmem:[#allocation2] sm:$0x3]
          %v1577 = vld [vmem:[#allocation2 + $0x2] sm:$0x3]
          %v1578 = vld [vmem:[#allocation2 + $0x4] sm:$0x3]
          %v1579 = vld [vmem:[#allocation2 + $0x6] sm:$0x3]
          %v1580 = vld [vmem:[#allocation2 + $0x8] sm:$0x3]
          %v1581 = vld [vmem:[#allocation2 + $0xa] sm:$0x3]
          %v1582 = vld [vmem:[#allocation2 + $0xc] sm:$0x3]
          %v1583 = vld [vmem:[#allocation2 + $0xe] sm:$0x3]
          %v1584 = vld [vmem:[#allocation3] sm:$0x3]
          %v1585 = vld [vmem:[#allocation3 + $0x2] sm:$0x3]
          %v1586 = vld [vmem:[#allocation3 + $0x4] sm:$0x3]
          %v1587 = vld [vmem:[#allocation3 + $0x6] sm:$0x3]
          %v1588 = vld [vmem:[#allocation3 + $0x8] sm:$0x3]
          %v1589 = vld [vmem:[#allocation3 + $0xa] sm:$0x3]
          %v1590 = vld [vmem:[#allocation3 + $0xc] sm:$0x3]
          %v1591 = vld [vmem:[#allocation3 + $0xe] sm:$0x3]
          %1593 = vset.pattern.permute.xlu0 0
          %1594 = vperm.xlu0 %1593, %v1584
          %v1595 = vpop.permute.xlu0 %1594
          %1598 = vset.pattern.permute.xlu0 0
          %1599 = vperm.xlu0 %1598, %v1585
          %v1600 = vpop.permute.xlu0 %1599
          %1603 = vset.pattern.permute.xlu0 0
          %1604 = vperm.xlu0 %1603, %v1586
          %v1605 = vpop.permute.xlu0 %1604
          %1608 = vset.pattern.permute.xlu0 0
          %1609 = vperm.xlu0 %1608, %v1587
          %v1610 = vpop.permute.xlu0 %1609
          %1613 = vset.pattern.permute.xlu0 0
          %1614 = vperm.xlu0 %1613, %v1588
          %v1615 = vpop.permute.xlu0 %1614
          %1618 = vset.pattern.permute.xlu0 0
          %1619 = vperm.xlu0 %1618, %v1589
          %v1620 = vpop.permute.xlu0 %1619
          %1623 = vset.pattern.permute.xlu0 0
          %1624 = vperm.xlu0 %1623, %v1590
          %v1625 = vpop.permute.xlu0 %1624
          %1628 = vset.pattern.permute.xlu0 0
          %1629 = vperm.xlu0 %1628, %v1591
          %v1630 = vpop.permute.xlu0 %1629
          %v1632 = vrcp.pop %v1595
          %v1633 = vmul.f32 %v1576, %v1632
          %v1634 = vrcp.pop %v1600
          %v1635 = vmul.f32 %v1577, %v1634
          %v1636 = vrcp.pop %v1605
          %v1637 = vmul.f32 %v1578, %v1636
          %v1638 = vrcp.pop %v1610
          %v1639 = vmul.f32 %v1579, %v1638
          %v1640 = vrcp.pop %v1615
          %v1641 = vmul.f32 %v1580, %v1640
          %v1642 = vrcp.pop %v1620
          %v1643 = vmul.f32 %v1581, %v1642
          %v1644 = vrcp.pop %v1625
          %v1645 = vmul.f32 %v1582, %v1644
          %v1646 = vrcp.pop %v1630
          %v1647 = vmul.f32 %v1583, %v1646
          %v1648 = vld [vmem:[%s518] sm:$0xff]
          %v1649 = vtanh.pop %v1648
          %v1650 = vld [vmem:[#allocation10] sm:$0xff]
          %v1651 = vld [vmem:[#allocation10 + $0x8] sm:$0xff]
          %v1652 = vld [vmem:[#allocation10 + $0x10] sm:$0xff]
          %v1653 = vld [vmem:[#allocation10 + $0x18] sm:$0xff]
          %v1654 = vld [vmem:[#allocation10 + $0x20] sm:$0xff]
          %v1655 = vld [vmem:[#allocation10 + $0x28] sm:$0xff]
          %v1656 = vld [vmem:[#allocation10 + $0x30] sm:$0xff]
          %v1657 = vld [vmem:[#allocation10 + $0x38] sm:$0xff]
          %v1658 = vld [vmem:[#allocation10 + $0x40] sm:$0xff]
          %v1659 = vld [vmem:[#allocation10 + $0x48] sm:$0xff]
          %v1660 = vld [vmem:[#allocation10 + $0x50] sm:$0xff]
          %v1661 = vld [vmem:[#allocation10 + $0x58] sm:$0xff]
          %v1662 = vld [vmem:[#allocation10 + $0x60] sm:$0xff]
          %v1663 = vld [vmem:[#allocation10 + $0x68] sm:$0xff]
          %v1664 = vld [vmem:[#allocation10 + $0x70] sm:$0xff]
          %v1665 = vld [vmem:[#allocation10 + $0x78] sm:$0xff]
          %v1666 = vld [vmem:[%s4] sm:$0x1]
          %v1668 = vlaneseq
          %v1669 = vshrl.u32 %v1668, 7
          %v1670 = vsub.s32 0, %v1669
          %v1671 = vrot.slane %v1666, %v1670
          %1673 = vmatprep.subr.mxu0 0.0
          %1674 = vmatpush1.msra.mxu0 %v1650
          %1675 = vmatprep.subr.mxu0 0.0
          %1676 = vmatpush1.msra.mxu0 %v1651
          %1677 = vmatprep.subr.mxu0 0.0
          %1678 = vmatpush1.msra.mxu0 %v1652
          %1679 = vmatprep.subr.mxu0 0.0
          %1680 = vmatpush1.msra.mxu0 %v1653
          %1681 = vmatprep.subr.mxu0 0.0
          %1682 = vmatpush1.msra.mxu0 %v1654
          %1683 = vmatprep.subr.mxu0 0.0
          %1684 = vmatpush1.msra.mxu0 %v1655
          %1685 = vmatprep.subr.mxu0 0.0
          %1686 = vmatpush1.msra.mxu0 %v1656
          %1687 = vmatprep.subr.mxu0 0.0
          %1688 = vmatpush1.msra.mxu0 %v1657
          %1689 = vmatprep.subr.mxu0 0.0
          %1690 = vmatpush1.msra.mxu0 %v1658
          %1691 = vmatprep.subr.mxu0 0.0
          %1692 = vmatpush1.msra.mxu0 %v1659
          %1693 = vmatprep.subr.mxu0 0.0
          %1694 = vmatpush1.msra.mxu0 %v1660
          %1695 = vmatprep.subr.mxu0 0.0
          %1696 = vmatpush1.msra.mxu0 %v1661
          %1697 = vmatprep.subr.mxu0 0.0
          %1698 = vmatpush1.msra.mxu0 %v1662
          %1699 = vmatprep.subr.mxu0 0.0
          %1700 = vmatpush1.msra.mxu0 %v1663
          %1701 = vmatprep.subr.mxu0 0.0
          %1702 = vmatpush1.msra.mxu0 %v1664
          %1703 = vmatprep.subr.mxu0 0.0
          %1704 = vmatpush1.msra.mxu0 %v1665
          %1705 = vmatprep.subr.mxu0 0.0
          %1706 = vmatpush1.msra.mxu0 0.0
          %1707 = vmatprep.subr.mxu0 0.0
          %1708 = vmatpush1.msra.mxu0 0.0
          %1709 = vmatprep.subr.mxu0 0.0
          %1710 = vmatpush1.msra.mxu0 0.0
          %1711 = vmatprep.subr.mxu0 0.0
          %1712 = vmatpush1.msra.mxu0 0.0
          %1713 = vmatprep.subr.mxu0 0.0
          %1714 = vmatpush1.msra.mxu0 0.0
          %1715 = vmatprep.subr.mxu0 0.0
          %1716 = vmatpush1.msra.mxu0 0.0
          %1717 = vmatprep.subr.mxu0 0.0
          %1718 = vmatpush1.msra.mxu0 0.0
          %1719 = vmatprep.subr.mxu0 0.0
          %1720 = vmatpush1.msra.mxu0 0.0
          %1721 = vmatprep.subr.mxu0 0.0
          %1722 = vmatpush1.msra.mxu0 0.0
          %1723 = vmatprep.subr.mxu0 0.0
          %1724 = vmatpush1.msra.mxu0 0.0
          %1725 = vmatprep.subr.mxu0 0.0
          %1726 = vmatpush1.msra.mxu0 0.0
          %1727 = vmatprep.subr.mxu0 0.0
          %1728 = vmatpush1.msra.mxu0 0.0
          %1729 = vmatprep.subr.mxu0 0.0
          %1730 = vmatpush1.msra.mxu0 0.0
          %1731 = vmatprep.subr.mxu0 0.0
          %1732 = vmatpush1.msra.mxu0 0.0
          %1733 = vmatprep.subr.mxu0 0.0
          %1734 = vmatpush1.msra.mxu0 0.0
          %1735 = vmatprep.subr.mxu0 0.0
          %1736 = vmatpush1.msra.mxu0 0.0
          %1737 = vmatprep.mubr.f32.mxu0 0.0
          %1738 = vmatmul.mubr.f32.gmra.mrb[0].mxu0 %v1649
          %v1739 = vpop.f32.mrb[0].mxu0
          %v1740 = vadd.f32 %v1671, %v1739
          %v1741 = vpop.f32.mrb[0].mxu0
          %1742 = vdwg.mxu0
          %v1743 = vtanh.pop %v1633
          %v1744 = vtanh.pop %v1635
          %v1745 = vtanh.pop %v1637
          %v1746 = vtanh.pop %v1639
          %v1747 = vtanh.pop %v1641
          %v1748 = vtanh.pop %v1643
          %v1749 = vtanh.pop %v1645
          %v1750 = vtanh.pop %v1647
          %v1751 = vld [vmem:[#allocation12] sm:$0xff]
          %v1752 = vld [vmem:[#allocation12 + $0x8] sm:$0xff]
          %v1753 = vld [vmem:[#allocation12 + $0x10] sm:$0xff]
          %v1754 = vld [vmem:[#allocation12 + $0x18] sm:$0xff]
          %v1755 = vld [vmem:[#allocation12 + $0x20] sm:$0xff]
          %v1756 = vld [vmem:[#allocation12 + $0x28] sm:$0xff]
          %v1757 = vld [vmem:[#allocation12 + $0x30] sm:$0xff]
          %v1758 = vld [vmem:[#allocation12 + $0x38] sm:$0xff]
          %v1759 = vld [vmem:[#allocation12 + $0x40] sm:$0xff]
          %v1760 = vld [vmem:[#allocation12 + $0x48] sm:$0xff]
          %v1761 = vld [vmem:[#allocation12 + $0x50] sm:$0xff]
          %v1762 = vld [vmem:[#allocation12 + $0x58] sm:$0xff]
          %v1763 = vld [vmem:[#allocation12 + $0x60] sm:$0xff]
          %v1764 = vld [vmem:[#allocation12 + $0x68] sm:$0xff]
          %v1765 = vld [vmem:[#allocation12 + $0x70] sm:$0xff]
          %v1766 = vld [vmem:[#allocation12 + $0x78] sm:$0xff]
          %v1767 = vld [vmem:[%s6] sm:$0x1]
          %v1769 = vlaneseq
          %v1770 = vshrl.u32 %v1769, 7
          %v1771 = vsub.s32 0, %v1770
          %v1772 = vrot.slane %v1767, %v1771
          %v1782 = vrot.slane %v1744, 7
          %vm1783 = vcmask 1041409
          %v1784 = vsel %vm1783, %v1782, %v1743
          %v1785 = vrot.slane %v1745, 6
          %vm1786 = vcmask 1042434
          %v1787 = vsel %vm1786, %v1785, %v1784
          %v1788 = vrot.slane %v1746, 5
          %vm1789 = vcmask 1043459
          %v1790 = vsel %vm1789, %v1788, %v1787
          %v1791 = vrot.slane %v1747, 4
          %vm1792 = vcmask 1044484
          %v1793 = vsel %vm1792, %v1791, %v1790
          %v1794 = vrot.slane %v1748, 3
          %vm1795 = vcmask 1045509
          %v1796 = vsel %vm1795, %v1794, %v1793
          %v1797 = vrot.slane %v1749, 2
          %vm1798 = vcmask 1046534
          %v1799 = vsel %vm1798, %v1797, %v1796
          %v1800 = vrot.slane %v1750, 1
          %vm1801 = vcmask 1047559
          %v1802 = vsel %vm1801, %v1800, %v1799
          %1804 = vmatprep.subr.mxu0 0.0
          %1805 = vmatpush1.msra.mxu0 %v1751
          %1806 = vmatprep.subr.mxu0 0.0
          %1807 = vmatpush1.msra.mxu0 %v1752
          %1808 = vmatprep.subr.mxu0 0.0
          %1809 = vmatpush1.msra.mxu0 %v1753
          %1810 = vmatprep.subr.mxu0 0.0
          %1811 = vmatpush1.msra.mxu0 %v1754
          %1812 = vmatprep.subr.mxu0 0.0
          %1813 = vmatpush1.msra.mxu0 %v1755
          %1814 = vmatprep.subr.mxu0 0.0
          %1815 = vmatpush1.msra.mxu0 %v1756
          %1816 = vmatprep.subr.mxu0 0.0
          %1817 = vmatpush1.msra.mxu0 %v1757
          %1818 = vmatprep.subr.mxu0 0.0
          %1819 = vmatpush1.msra.mxu0 %v1758
          %1820 = vmatprep.subr.mxu0 0.0
          %1821 = vmatpush1.msra.mxu0 %v1759
          %1822 = vmatprep.subr.mxu0 0.0
          %1823 = vmatpush1.msra.mxu0 %v1760
          %1824 = vmatprep.subr.mxu0 0.0
          %1825 = vmatpush1.msra.mxu0 %v1761
          %1826 = vmatprep.subr.mxu0 0.0
          %1827 = vmatpush1.msra.mxu0 %v1762
          %1828 = vmatprep.subr.mxu0 0.0
          %1829 = vmatpush1.msra.mxu0 %v1763
          %1830 = vmatprep.subr.mxu0 0.0
          %1831 = vmatpush1.msra.mxu0 %v1764
          %1832 = vmatprep.subr.mxu0 0.0
          %1833 = vmatpush1.msra.mxu0 %v1765
          %1834 = vmatprep.subr.mxu0 0.0
          %1835 = vmatpush1.msra.mxu0 %v1766
          %1836 = vmatprep.subr.mxu0 0.0
          %1837 = vmatpush1.msra.mxu0 0.0
          %1838 = vmatprep.subr.mxu0 0.0
          %1839 = vmatpush1.msra.mxu0 0.0
          %1840 = vmatprep.subr.mxu0 0.0
          %1841 = vmatpush1.msra.mxu0 0.0
          %1842 = vmatprep.subr.mxu0 0.0
          %1843 = vmatpush1.msra.mxu0 0.0
          %1844 = vmatprep.subr.mxu0 0.0
          %1845 = vmatpush1.msra.mxu0 0.0
          %1846 = vmatprep.subr.mxu0 0.0
          %1847 = vmatpush1.msra.mxu0 0.0
          %1848 = vmatprep.subr.mxu0 0.0
          %1849 = vmatpush1.msra.mxu0 0.0
          %1850 = vmatprep.subr.mxu0 0.0
          %1851 = vmatpush1.msra.mxu0 0.0
          %1852 = vmatprep.subr.mxu0 0.0
          %1853 = vmatpush1.msra.mxu0 0.0
          %1854 = vmatprep.subr.mxu0 0.0
          %1855 = vmatpush1.msra.mxu0 0.0
          %1856 = vmatprep.subr.mxu0 0.0
          %1857 = vmatpush1.msra.mxu0 0.0
          %1858 = vmatprep.subr.mxu0 0.0
          %1859 = vmatpush1.msra.mxu0 0.0
          %1860 = vmatprep.subr.mxu0 0.0
          %1861 = vmatpush1.msra.mxu0 0.0
          %1862 = vmatprep.subr.mxu0 0.0
          %1863 = vmatpush1.msra.mxu0 0.0
          %1864 = vmatprep.subr.mxu0 0.0
          %1865 = vmatpush1.msra.mxu0 0.0
          %1866 = vmatprep.subr.mxu0 0.0
          %1867 = vmatpush1.msra.mxu0 0.0
          %1868 = vmatprep.mubr.f32.mxu0 0.0
          %1869 = vmatmul.mubr.f32.gmra.mrb[0].mxu0 %v1802
          %v1870 = vpop.f32.mrb[0].mxu0
          %v1871 = vadd.f32 %v1772, %v1870
          %v1872 = vpop.f32.mrb[0].mxu0
          %1873 = vdwg.mxu0
          %v1874 = vld [vmem:[#allocation13] sm:$0xff]
          %v1875 = vld [vmem:[#allocation13 + $0x8] sm:$0xff]
          %v1876 = vld [vmem:[#allocation13 + $0x10] sm:$0xff]
          %v1877 = vld [vmem:[#allocation13 + $0x18] sm:$0xff]
          %v1878 = vld [vmem:[#allocation13 + $0x20] sm:$0xff]
          %v1879 = vld [vmem:[#allocation13 + $0x28] sm:$0xff]
          %v1880 = vld [vmem:[#allocation13 + $0x30] sm:$0xff]
          %v1881 = vld [vmem:[#allocation13 + $0x38] sm:$0xff]
          %v1882 = vld [vmem:[#allocation13 + $0x40] sm:$0xff]
          %v1883 = vld [vmem:[#allocation13 + $0x48] sm:$0xff]
          %v1884 = vld [vmem:[#allocation13 + $0x50] sm:$0xff]
          %v1885 = vld [vmem:[#allocation13 + $0x58] sm:$0xff]
          %v1886 = vld [vmem:[#allocation13 + $0x60] sm:$0xff]
          %v1887 = vld [vmem:[#allocation13 + $0x68] sm:$0xff]
          %v1888 = vld [vmem:[#allocation13 + $0x70] sm:$0xff]
          %v1889 = vld [vmem:[#allocation13 + $0x78] sm:$0xff]
          %v1890 = vld [vmem:[%s8] sm:$0x1]
          %v1892 = vlaneseq
          %v1893 = vshrl.u32 %v1892, 7
          %v1894 = vsub.s32 0, %v1893
          %v1895 = vrot.slane %v1890, %v1894
          %v1897 = vrot.slane %v1743, 1
          %v1898 = vsel %vm1783, %v1744, %v1897
          %v1899 = vrot.slane %v1745, 7
          %v1900 = vsel %vm1786, %v1899, %v1898
          %v1901 = vrot.slane %v1746, 6
          %v1902 = vsel %vm1789, %v1901, %v1900
          %v1903 = vrot.slane %v1747, 5
          %v1904 = vsel %vm1792, %v1903, %v1902
          %v1905 = vrot.slane %v1748, 4
          %v1906 = vsel %vm1795, %v1905, %v1904
          %v1907 = vrot.slane %v1749, 3
          %v1908 = vsel %vm1798, %v1907, %v1906
          %v1909 = vrot.slane %v1750, 2
          %v1910 = vsel %vm1801, %v1909, %v1908
          %1912 = vmatprep.subr.mxu0 0.0
          %1913 = vmatpush1.msra.mxu0 %v1874
          %1914 = vmatprep.subr.mxu0 0.0
          %1915 = vmatpush1.msra.mxu0 %v1875
          %1916 = vmatprep.subr.mxu0 0.0
          %1917 = vmatpush1.msra.mxu0 %v1876
          %1918 = vmatprep.subr.mxu0 0.0
          %1919 = vmatpush1.msra.mxu0 %v1877
          %1920 = vmatprep.subr.mxu0 0.0
          %1921 = vmatpush1.msra.mxu0 %v1878
          %1922 = vmatprep.subr.mxu0 0.0
          %1923 = vmatpush1.msra.mxu0 %v1879
          %1924 = vmatprep.subr.mxu0 0.0
          %1925 = vmatpush1.msra.mxu0 %v1880
          %1926 = vmatprep.subr.mxu0 0.0
          %1927 = vmatpush1.msra.mxu0 %v1881
          %1928 = vmatprep.subr.mxu0 0.0
          %1929 = vmatpush1.msra.mxu0 %v1882
          %1930 = vmatprep.subr.mxu0 0.0
          %1931 = vmatpush1.msra.mxu0 %v1883
          %1932 = vmatprep.subr.mxu0 0.0
          %1933 = vmatpush1.msra.mxu0 %v1884
          %1934 = vmatprep.subr.mxu0 0.0
          %1935 = vmatpush1.msra.mxu0 %v1885
          %1936 = vmatprep.subr.mxu0 0.0
          %1937 = vmatpush1.msra.mxu0 %v1886
          %1938 = vmatprep.subr.mxu0 0.0
          %1939 = vmatpush1.msra.mxu0 %v1887
          %1940 = vmatprep.subr.mxu0 0.0
          %1941 = vmatpush1.msra.mxu0 %v1888
          %1942 = vmatprep.subr.mxu0 0.0
          %1943 = vmatpush1.msra.mxu0 %v1889
          %1944 = vmatprep.subr.mxu0 0.0
          %1945 = vmatpush1.msra.mxu0 0.0
          %1946 = vmatprep.subr.mxu0 0.0
          %1947 = vmatpush1.msra.mxu0 0.0
          %1948 = vmatprep.subr.mxu0 0.0
          %1949 = vmatpush1.msra.mxu0 0.0
          %1950 = vmatprep.subr.mxu0 0.0
          %1951 = vmatpush1.msra.mxu0 0.0
          %1952 = vmatprep.subr.mxu0 0.0
          %1953 = vmatpush1.msra.mxu0 0.0
          %1954 = vmatprep.subr.mxu0 0.0
          %1955 = vmatpush1.msra.mxu0 0.0
          %1956 = vmatprep.subr.mxu0 0.0
          %1957 = vmatpush1.msra.mxu0 0.0
          %1958 = vmatprep.subr.mxu0 0.0
          %1959 = vmatpush1.msra.mxu0 0.0
          %1960 = vmatprep.subr.mxu0 0.0
          %1961 = vmatpush1.msra.mxu0 0.0
          %1962 = vmatprep.subr.mxu0 0.0
          %1963 = vmatpush1.msra.mxu0 0.0
          %1964 = vmatprep.subr.mxu0 0.0
          %1965 = vmatpush1.msra.mxu0 0.0
          %1966 = vmatprep.subr.mxu0 0.0
          %1967 = vmatpush1.msra.mxu0 0.0
          %1968 = vmatprep.subr.mxu0 0.0
          %1969 = vmatpush1.msra.mxu0 0.0
          %1970 = vmatprep.subr.mxu0 0.0
          %1971 = vmatpush1.msra.mxu0 0.0
          %1972 = vmatprep.subr.mxu0 0.0
          %1973 = vmatpush1.msra.mxu0 0.0
          %1974 = vmatprep.subr.mxu0 0.0
          %1975 = vmatpush1.msra.mxu0 0.0
          %1976 = vmatprep.mubr.f32.mxu0 0.0
          %1977 = vmatmul.mubr.f32.gmra.mrb[0].mxu0 %v1910
          %v1978 = vpop.f32.mrb[0].mxu0
          %v1979 = vadd.f32 %v1895, %v1978
          %v1980 = vpop.f32.mrb[0].mxu0
          %1981 = vdwg.mxu0
          %v1982 = vadd.f32 %v1740, %v1871
          %v1983 = vadd.f32 %v1982, %v1979
          %1984 = vadd.xlane.f32.xlu0 %v1983
          %v1985 = vpop.xlane.xlu0 %1984
          %v1986 = vrcp.pop 384.0
          %v1987 = vmul.f32 %v1985, %v1986
          %v1988 = vsub.f32 %v1740, %v1987
          %v1989 = vsub.f32 %v1871, %v1987
          %v1990 = vsub.f32 %v1979, %v1987
          %v1991 = vmul.f32 %v1988, %v1988
          %v1992 = vmul.f32 %v1989, %v1989
          %v1993 = vmul.f32 %v1990, %v1990
          %v1994 = vadd.f32 %v1991, %v1992
          %v1995 = vadd.f32 %v1994, %v1993
          %1996 = vadd.xlane.f32.xlu0 %v1995
          %v1997 = vpop.xlane.xlu0 %1996
          %v1998 = vmul.f32 %v1997, %v1986
          %v1999 = vadd.f32 %v1998, 1e-05
          %v2000 = vrsqrt.pop %v1999
          %v2001 = vmul.f32 %v1988, %v2000
          %v2002 = vmul.f32 %v1989, %v2000
          %v2003 = vmul.f32 %v1990, %v2000
          %v2004 = vld [vmem:[#allocation15] sm:$0xff]
          %v2005 = vld [vmem:[#allocation15 + $0x8] sm:$0xff]
          %v2006 = vld [vmem:[#allocation15 + $0x10] sm:$0xff]
          %v2007 = vld [vmem:[#allocation15 + $0x18] sm:$0xff]
          %v2008 = vld [vmem:[#allocation15 + $0x20] sm:$0xff]
          %v2009 = vld [vmem:[#allocation15 + $0x28] sm:$0xff]
          %v2010 = vld [vmem:[#allocation15 + $0x30] sm:$0xff]
          %v2011 = vld [vmem:[#allocation15 + $0x38] sm:$0xff]
          %v2012 = vld [vmem:[#allocation15 + $0x40] sm:$0xff]
          %v2013 = vld [vmem:[#allocation15 + $0x48] sm:$0xff]
          %v2014 = vld [vmem:[#allocation15 + $0x50] sm:$0xff]
          %v2015 = vld [vmem:[#allocation15 + $0x58] sm:$0xff]
          %v2016 = vld [vmem:[#allocation15 + $0x60] sm:$0xff]
          %v2017 = vld [vmem:[#allocation15 + $0x68] sm:$0xff]
          %v2018 = vld [vmem:[#allocation15 + $0x70] sm:$0xff]
          %v2019 = vld [vmem:[#allocation15 + $0x78] sm:$0xff]
          %v2020 = vld [vmem:[#allocation15 + $0x80] sm:$0xff]
          %v2021 = vld [vmem:[#allocation15 + $0x88] sm:$0xff]
          %v2022 = vld [vmem:[#allocation15 + $0x90] sm:$0xff]
          %v2023 = vld [vmem:[#allocation15 + $0x98] sm:$0xff]
          %v2024 = vld [vmem:[#allocation15 + $0xa0] sm:$0xff]
          %v2025 = vld [vmem:[#allocation15 + $0xa8] sm:$0xff]
          %v2026 = vld [vmem:[#allocation15 + $0xb0] sm:$0xff]
          %v2027 = vld [vmem:[#allocation15 + $0xb8] sm:$0xff]
          %v2028 = vld [vmem:[#allocation15 + $0xc0] sm:$0xff]
          %v2029 = vld [vmem:[#allocation15 + $0xc8] sm:$0xff]
          %v2030 = vld [vmem:[#allocation15 + $0xd0] sm:$0xff]
          %v2031 = vld [vmem:[#allocation15 + $0xd8] sm:$0xff]
          %v2032 = vld [vmem:[#allocation15 + $0xe0] sm:$0xff]
          %v2033 = vld [vmem:[#allocation15 + $0xe8] sm:$0xff]
          %v2034 = vld [vmem:[#allocation15 + $0xf0] sm:$0xff]
          %v2035 = vld [vmem:[#allocation15 + $0xf8] sm:$0xff]
          %v2036 = vld [vmem:[#allocation15 + $0x100] sm:$0xff]
          %v2037 = vld [vmem:[#allocation15 + $0x108] sm:$0xff]
          %v2038 = vld [vmem:[#allocation15 + $0x110] sm:$0xff]
          %v2039 = vld [vmem:[#allocation15 + $0x118] sm:$0xff]
          %v2040 = vld [vmem:[#allocation15 + $0x120] sm:$0xff]
          %v2041 = vld [vmem:[#allocation15 + $0x128] sm:$0xff]
          %v2042 = vld [vmem:[#allocation15 + $0x130] sm:$0xff]
          %v2043 = vld [vmem:[#allocation15 + $0x138] sm:$0xff]
          %v2044 = vld [vmem:[#allocation15 + $0x140] sm:$0xff]
          %v2045 = vld [vmem:[#allocation15 + $0x148] sm:$0xff]
          %v2046 = vld [vmem:[#allocation15 + $0x150] sm:$0xff]
          %v2047 = vld [vmem:[#allocation15 + $0x158] sm:$0xff]
          %v2048 = vld [vmem:[#allocation15 + $0x160] sm:$0xff]
          %v2049 = vld [vmem:[#allocation15 + $0x168] sm:$0xff]
          %v2050 = vld [vmem:[#allocation15 + $0x170] sm:$0xff]
          %v2051 = vld [vmem:[#allocation15 + $0x178] sm:$0xff]
          %v2052 = vld [vmem:[%s10] sm:$0x1]
          %v2054 = vlaneseq
          %v2055 = vshrl.u32 %v2054, 7
          %v2056 = vsub.s32 0, %v2055
          %v2057 = vrot.slane %v2052, %v2056
          %2059 = vmatprep.subr.mxu0 0.0
          %2060 = vmatpush1.msra.mxu0 %v2004
          %2061 = vmatprep.subr.mxu0 0.0
          %2062 = vmatpush1.msra.mxu0 %v2005
          %2063 = vmatprep.subr.mxu0 0.0
          %2064 = vmatpush1.msra.mxu0 %v2006
          %2065 = vmatprep.subr.mxu0 0.0
          %2066 = vmatpush1.msra.mxu0 %v2007
          %2067 = vmatprep.subr.mxu0 0.0
          %2068 = vmatpush1.msra.mxu0 %v2008
          %2069 = vmatprep.subr.mxu0 0.0
          %2070 = vmatpush1.msra.mxu0 %v2009
          %2071 = vmatprep.subr.mxu0 0.0
          %2072 = vmatpush1.msra.mxu0 %v2010
          %2073 = vmatprep.subr.mxu0 0.0
          %2074 = vmatpush1.msra.mxu0 %v2011
          %2075 = vmatprep.subr.mxu0 0.0
          %2076 = vmatpush1.msra.mxu0 %v2012
          %2077 = vmatprep.subr.mxu0 0.0
          %2078 = vmatpush1.msra.mxu0 %v2013
          %2079 = vmatprep.subr.mxu0 0.0
          %2080 = vmatpush1.msra.mxu0 %v2014
          %2081 = vmatprep.subr.mxu0 0.0
          %2082 = vmatpush1.msra.mxu0 %v2015
          %2083 = vmatprep.subr.mxu0 0.0
          %2084 = vmatpush1.msra.mxu0 %v2016
          %2085 = vmatprep.subr.mxu0 0.0
          %2086 = vmatpush1.msra.mxu0 %v2017
          %2087 = vmatprep.subr.mxu0 0.0
          %2088 = vmatpush1.msra.mxu0 %v2018
          %2089 = vmatprep.subr.mxu0 0.0
          %2090 = vmatpush1.msra.mxu0 %v2019
          %2091 = vmatprep.subr.mxu0 0.0
          %2092 = vmatpush1.msra.mxu0 %v2020
          %2093 = vmatprep.subr.mxu0 0.0
          %2094 = vmatpush1.msra.mxu0 %v2021
          %2095 = vmatprep.subr.mxu0 0.0
          %2096 = vmatpush1.msra.mxu0 %v2022
          %2097 = vmatprep.subr.mxu0 0.0
          %2098 = vmatpush1.msra.mxu0 %v2023
          %2099 = vmatprep.subr.mxu0 0.0
          %2100 = vmatpush1.msra.mxu0 %v2024
          %2101 = vmatprep.subr.mxu0 0.0
          %2102 = vmatpush1.msra.mxu0 %v2025
          %2103 = vmatprep.subr.mxu0 0.0
          %2104 = vmatpush1.msra.mxu0 %v2026
          %2105 = vmatprep.subr.mxu0 0.0
          %2106 = vmatpush1.msra.mxu0 %v2027
          %2107 = vmatprep.subr.mxu0 0.0
          %2108 = vmatpush1.msra.mxu0 %v2028
          %2109 = vmatprep.subr.mxu0 0.0
          %2110 = vmatpush1.msra.mxu0 %v2029
          %2111 = vmatprep.subr.mxu0 0.0
          %2112 = vmatpush1.msra.mxu0 %v2030
          %2113 = vmatprep.subr.mxu0 0.0
          %2114 = vmatpush1.msra.mxu0 %v2031
          %2115 = vmatprep.subr.mxu0 0.0
          %2116 = vmatpush1.msra.mxu0 %v2032
          %2117 = vmatprep.subr.mxu0 0.0
          %2118 = vmatpush1.msra.mxu0 %v2033
          %2119 = vmatprep.subr.mxu0 0.0
          %2120 = vmatpush1.msra.mxu0 %v2034
          %2121 = vmatprep.subr.mxu0 0.0
          %2122 = vmatpush1.msra.mxu0 %v2035
          %2123 = vmatprep.mubr.f32.mxu0 %v2002
          %2124 = vmatmul.mubr.f32.gmra.mrb[0].mxu0 %v2001
          %v2125 = vpop.f32.mrb[0].mxu0
          %v2126 = vadd.f32 %v2057, %v2125
          %v2127 = vpop.f32.mrb[0].mxu0
          %2128 = vdwg.mxu0
          %2129 = vmatprep.subr.mxu0 0.0
          %2130 = vmatpush1.msra.mxu0 %v2036
          %2131 = vmatprep.subr.mxu0 0.0
          %2132 = vmatpush1.msra.mxu0 %v2037
          %2133 = vmatprep.subr.mxu0 0.0
          %2134 = vmatpush1.msra.mxu0 %v2038
          %2135 = vmatprep.subr.mxu0 0.0
          %2136 = vmatpush1.msra.mxu0 %v2039
          %2137 = vmatprep.subr.mxu0 0.0
          %2138 = vmatpush1.msra.mxu0 %v2040
          %2139 = vmatprep.subr.mxu0 0.0
          %2140 = vmatpush1.msra.mxu0 %v2041
          %2141 = vmatprep.subr.mxu0 0.0
          %2142 = vmatpush1.msra.mxu0 %v2042
          %2143 = vmatprep.subr.mxu0 0.0
          %2144 = vmatpush1.msra.mxu0 %v2043
          %2145 = vmatprep.subr.mxu0 0.0
          %2146 = vmatpush1.msra.mxu0 %v2044
          %2147 = vmatprep.subr.mxu0 0.0
          %2148 = vmatpush1.msra.mxu0 %v2045
          %2149 = vmatprep.subr.mxu0 0.0
          %2150 = vmatpush1.msra.mxu0 %v2046
          %2151 = vmatprep.subr.mxu0 0.0
          %2152 = vmatpush1.msra.mxu0 %v2047
          %2153 = vmatprep.subr.mxu0 0.0
          %2154 = vmatpush1.msra.mxu0 %v2048
          %2155 = vmatprep.subr.mxu0 0.0
          %2156 = vmatpush1.msra.mxu0 %v2049
          %2157 = vmatprep.subr.mxu0 0.0
          %2158 = vmatpush1.msra.mxu0 %v2050
          %2159 = vmatprep.subr.mxu0 0.0
          %2160 = vmatpush1.msra.mxu0 %v2051
          %2161 = vmatprep.subr.mxu0 0.0
          %2162 = vmatpush1.msra.mxu0 0.0
          %2163 = vmatprep.subr.mxu0 0.0
          %2164 = vmatpush1.msra.mxu0 0.0
          %2165 = vmatprep.subr.mxu0 0.0
          %2166 = vmatpush1.msra.mxu0 0.0
          %2167 = vmatprep.subr.mxu0 0.0
          %2168 = vmatpush1.msra.mxu0 0.0
          %2169 = vmatprep.subr.mxu0 0.0
          %2170 = vmatpush1.msra.mxu0 0.0
          %2171 = vmatprep.subr.mxu0 0.0
          %2172 = vmatpush1.msra.mxu0 0.0
          %2173 = vmatprep.subr.mxu0 0.0
          %2174 = vmatpush1.msra.mxu0 0.0
          %2175 = vmatprep.subr.mxu0 0.0
          %2176 = vmatpush1.msra.mxu0 0.0
          %2177 = vmatprep.subr.mxu0 0.0
          %2178 = vmatpush1.msra.mxu0 0.0
          %2179 = vmatprep.subr.mxu0 0.0
          %2180 = vmatpush1.msra.mxu0 0.0
          %2181 = vmatprep.subr.mxu0 0.0
          %2182 = vmatpush1.msra.mxu0 0.0
          %2183 = vmatprep.subr.mxu0 0.0
          %2184 = vmatpush1.msra.mxu0 0.0
          %2185 = vmatprep.subr.mxu0 0.0
          %2186 = vmatpush1.msra.mxu0 0.0
          %2187 = vmatprep.subr.mxu0 0.0
          %2188 = vmatpush1.msra.mxu0 0.0
          %2189 = vmatprep.subr.mxu0 0.0
          %2190 = vmatpush1.msra.mxu0 0.0
          %2191 = vmatprep.subr.mxu0 0.0
          %2192 = vmatpush1.msra.mxu0 0.0
          %2193 = vmatprep.mubr.f32.mxu0 0.0
          %2194 = vmatmul.mubr.f32.gmra.mrb[0].mxu0 %v2003
          %v2195 = vpop.f32.mrb[0].mxu0
          %v2196 = vadd.f32 %v2126, %v2195
          %v2197 = vpop.f32.mrb[0].mxu0
          %2198 = vdwg.mxu0
          %2199 = vst [vmem:[%s582] sm:$0xff] %v2196
        $region100: #{tpu_custom_call.1} parent=63 // pred_fallthru
          _
        %s2200 = sand.u32 %s303, 1
        %s2201 = scalar_lea.sflag [#allocation6], %s2200
        %s2202 = sand.u32 %s303, 1
        %s2203 = smul.addr %s2202, 8
        %s2204 = scalar_lea.vmem [#allocation16], %s2203
        // Predicated region
        $region101: #{tpu_custom_call.1} parent=63 // pred_check
          %p2205 = pneg %p313
        $region102: #{tpu_custom_call.1} parent=63 // pred_check_branch
          %2207 = sbr.rel (%p2205) target = $region104
        $region103: #{tpu_custom_call.1} parent=63 // pred_region
          %s2209 = ssub.s32 128, 128
          %2210 = vsyncadd %s2201, %s2209
          %s2211 = smul.addr %s37, 128
          %s2212 = scalar_lea.hbm %s11, %s2211
          %s2214 = sshll.u32 %s2204, 4
          %s2215 = int_to_ptr.vmem [resolvable:$true] %s2214
          %2217 = dma.vmem_to_hbm [thread:$0]  %s2215, 128, %s2212, %s2201
        $region104: #{tpu_custom_call.1} parent=63 // pred_fallthru
          _
      $region64: #{tpu_custom_call.1} parent=5 // pred_fallthru
        _
      %p2218 = scmp.le.s32.totalorder 2, %s28
      // Predicated region
      $region105: #{tpu_custom_call.1} parent=5 // pred_check
        %p2219 = pneg %p2218
      $region106: #{tpu_custom_call.1} parent=5 // pred_check_branch
        %2221 = sbr.rel (%p2219) target = $region108
      $region107: #{tpu_custom_call.1} parent=5 // pred_region
        %s2222 = ssub.s32 %s28, 2
        // Predicated region
        $region109: #{tpu_custom_call.1} parent=107 // pred_check
          %p2223 = pneg %p319
        $region110: #{tpu_custom_call.1} parent=107 // pred_check_branch
          %2225 = sbr.rel (%p2223) target = $region112
        $region111: #{tpu_custom_call.1} parent=107 // pred_region
          %s2226 = sand.u32 %s304, 1
          %s2227 = scalar_lea.sflag [#allocation6], %s2226
          %s2228 = sand.u32 %s304, 1
          %s2229 = smul.addr %s2228, 8
          %s2230 = scalar_lea.vmem [#allocation16], %s2229
          %2231 = dma.done %s2227, 128
        $region112: #{tpu_custom_call.1} parent=107 // pred_fallthru
          _
      $region108: #{tpu_custom_call.1} parent=5 // pred_fallthru
        _
    $region6: #{tpu_custom_call.1} parent=1 // loop_footer
      %s32 = sadd.s32 1, %s28
    $region7: #{tpu_custom_call.1} parent=1 // loop_footer_branch
      %27 = sbr.rel target = $region3
    $region8: #{tpu_custom_call.1} parent=1 // loop_exit
      _
    %2232 = vsyncpa [#allocation5], 1
    %s2233 = scalar_lea.sflag [#allocation5], 1
    %2234 = vsyncpa %s2233, 1
    %2235 = vsyncpa [#allocation8], 1
    %s2236 = scalar_lea.sflag [#allocation8], 1
    %2237 = vsyncpa %s2236, 1
    %2238 = vsyncpa [#allocation11], 1
    %2239 = vsyncpa [#allocation14], 1
    %2240 = vsyncpa [#allocation6], 1
    %s2241 = scalar_lea.sflag [#allocation6], 1
    %2242 = vsyncpa %s2241, 1

</llo_original>
